<compile_context>
chip_gen: v7x
topology: tpu7x:2x2x1
jax: 0.10.0
libtpu: 0.0.40
codegen_flags: <defaults>
</compile_context>

<pallas_src>
import jax
import jax.numpy as jnp
from jax.experimental import pallas as pl
from jax.experimental.pallas import tpu as pltpu

# ---- model dimensions ----
INPUT_DIM = 3
HIDDEN_DIM = 128
LATENT_DIM = HIDDEN_DIM // 2      # 64, forced by x.chunk(2, dim=-1) in forward()

LANE = 128                        # TPU lane width
IN_PAD = LANE                     # input / reconstruction features padded 3 -> 128
TILE_B = 256                      # batch rows per grid step (multiple of 8)


def cvae_kernel(
    x_ref, eps_ref,
    ew1_ref, eb1_ref, ew2_ref, eb2_ref,
    dw1x_ref, db1_ref, dw2_ref, db2_ref, dw3_ref, db3_ref,
    recon_ref, zstats_ref,
):
    """Full cVAE forward for one (TILE_B, lane-padded) batch block."""
    f32 = jnp.float32
    bf16 = jnp.bfloat16

    def dense(a, w_ref, b_ref):
        # bf16 MXU matmul, f32 accumulation, f32 bias add.
        return jnp.dot(a.astype(bf16), w_ref[...], preferred_element_type=f32) + b_ref[...]

    # ---- encoder: Linear -> ReLU -> Linear -> ReLU ----
    h = jnp.maximum(dense(x_ref[...], ew1_ref, eb1_ref), 0.0)
    h = jnp.maximum(dense(h, ew2_ref, eb2_ref), 0.0)   # (TB, 128) = [z_mean | z_log_var]

    # Single fused, lane-dense store of the chunk(2) pair; the wrapper splits it.
    zstats_ref[...] = h

    # ---- reparameterization WITHOUT lane slicing ----
    #   z_ext[:, :L] = z_mean
    #   z_ext[:, L:] = exp(0.5 * z_log_var) * eps   (eps_ref is left-padded with zeros)
    lane = jax.lax.broadcasted_iota(jnp.int32, (1, HIDDEN_DIM), 1)
    z_ext = jnp.where(lane < LATENT_DIM, h, jnp.exp(0.5 * h) * eps_ref[...])

    # ---- decoder: Linear -> ReLU -> Linear -> ReLU -> Linear ----
    # dw1x = [dw1; dw1] stacked along K, so z_ext @ dw1x == (z_mean + exp(.5*lv)*eps) @ dw1.
    d = jnp.maximum(dense(z_ext, dw1x_ref, db1_ref), 0.0)
    d = jnp.maximum(dense(d, dw2_ref, db2_ref), 0.0)
    recon_ref[...] = dense(d, dw3_ref, db3_ref)        # columns >= INPUT_DIM stay zero


def prepare_kernel_params(params):
    """Pad / stack / cast the master f32 params into the lane-dense bf16 kernel layout."""
    ew1, eb1, ew2, eb2, dw1, db1, dw2, db2, dw3, db3 = params
    bf16 = jnp.bfloat16

    ew1_p = jnp.zeros((IN_PAD, HIDDEN_DIM), jnp.float32).at[:INPUT_DIM].set(ew1).astype(bf16)
    dw1x_p = jnp.concatenate([dw1, dw1], axis=0).astype(bf16)               # (2*LATENT, HIDDEN)
    dw3_p = jnp.zeros((HIDDEN_DIM, IN_PAD), jnp.float32).at[:, :INPUT_DIM].set(dw3).astype(bf16)
    db3_p = jnp.zeros((1, IN_PAD), jnp.float32).at[0, :INPUT_DIM].set(db3)

    def bias(b):
        return b.reshape(1, -1).astype(jnp.float32)

    return (ew1_p, bias(eb1), ew2.astype(bf16), bias(eb2),
            dw1x_p, bias(db1), dw2.astype(bf16), bias(db2),
            dw3_p, db3_p)


def cvae_forward(x, eps, params, tile_b=TILE_B):
    """Runs the cVAE forward with a 1-D batch grid; returns (recon, z_mean, z_log_var)."""
    B = x.shape[0]
    b_pad = pl.cdiv(B, tile_b) * tile_b

    # Lane-pad inputs: features 3 -> 128; eps left-padded so its LATENT values sit in
    # lanes [LATENT, 2*LATENT) and line up with z_log_var inside the kernel.
    x_pad = jnp.zeros((b_pad, IN_PAD), jnp.float32).at[:B, :INPUT_DIM].set(x)
    eps_pad = jnp.zeros((b_pad, HIDDEN_DIM), jnp.float32).at[:B, LATENT_DIM:].set(eps)

    kparams = prepare_kernel_params(params)

    def batch_spec(feat):
        return pl.BlockSpec((tile_b, feat), lambda i: (i, 0))

    def replicated(shape):
        return pl.BlockSpec(shape, lambda i: (0,) * len(shape))

    recon_pad, zstats = pl.pallas_call(
        cvae_kernel,
        grid=(b_pad // tile_b,),
        out_shape=(
            jax.ShapeDtypeStruct((b_pad, IN_PAD), jnp.float32),      # padded reconstruction
            jax.ShapeDtypeStruct((b_pad, HIDDEN_DIM), jnp.float32),  # [z_mean | z_log_var]
        ),
        in_specs=[batch_spec(IN_PAD), batch_spec(HIDDEN_DIM)]
                 + [replicated(p.shape) for p in kparams],
        out_specs=(batch_spec(IN_PAD), batch_spec(HIDDEN_DIM)),
        compiler_params=pltpu.CompilerParams(
            dimension_semantics=("parallel",),
            vmem_limit_bytes=32 * 1024 * 1024,
        ),
    )(x_pad, eps_pad, *kparams)

    recon = recon_pad[:B, :INPUT_DIM]
    z_mean = zstats[:B, :LATENT_DIM]
    z_log_var = zstats[:B, LATENT_DIM:]
    return recon, z_mean, z_log_var


def init_params(key):
    """Deterministic master-f32 parameters (shapes mirror the nn.Linear layers, W=(in,out))."""
    ks = jax.random.split(key, 10)

    def linear(kw, kb, fan_in, fan_out):
        lim = 1.0 / jnp.sqrt(jnp.float32(fan_in))
        w = jax.random.uniform(kw, (fan_in, fan_out), jnp.float32, -lim, lim)
        b = jax.random.uniform(kb, (fan_out,), jnp.float32, -lim, lim)
        return w, b

    ew1, eb1 = linear(ks[0], ks[1], INPUT_DIM, HIDDEN_DIM)
    ew2, eb2 = linear(ks[2], ks[3], HIDDEN_DIM, HIDDEN_DIM)
    dw1, db1 = linear(ks[4], ks[5], LATENT_DIM, HIDDEN_DIM)
    dw2, db2 = linear(ks[6], ks[7], HIDDEN_DIM, HIDDEN_DIM)
    dw3, db3 = linear(ks[8], ks[9], HIDDEN_DIM, INPUT_DIM)
    return (ew1, eb1, ew2, eb2, dw1, db1, dw2, db2, dw3, db3)


def reference_forward(x, eps, params):
    """Plain-JAX reference with PyTorch forward structure and the same bf16-matmul /
    f32-accumulate numeric contract as the kernel (no padding / stacking tricks)."""
    ew1, eb1, ew2, eb2, dw1, db1, dw2, db2, dw3, db3 = params

    def mm(a, w):
        return jnp.dot(a.astype(jnp.bfloat16), w.astype(jnp.bfloat16),
                       preferred_element_type=jnp.float32)

    h = jnp.maximum(mm(x, ew1) + eb1, 0.0)
    h = jnp.maximum(mm(h, ew2) + eb2, 0.0)
    z_mean, z_log_var = jnp.split(h, 2, axis=-1)
    z = z_mean + jnp.exp(0.5 * z_log_var) * eps
    d = jnp.maximum(mm(z, dw1) + db1, 0.0)
    d = jnp.maximum(mm(d, dw2) + db2, 0.0)
    recon = mm(d, dw3) + db3
    return recon, z_mean, z_log_var


if __name__ == "__main__":
    BATCH = 384   # deliberately not a multiple of TILE_B to exercise the batch-padding path

    key = jax.random.PRNGKey(0)
    k_params, k_x, k_eps = jax.random.split(key, 3)

    params = init_params(k_params)
    x = jax.random.normal(k_x, (BATCH, INPUT_DIM), jnp.float32)
    # torch.randn_like(z_mean) -> explicit deterministic epsilon fed to the kernel
    eps = jax.random.normal(k_eps, (BATCH, LATENT_DIM), jnp.float32)

    recon, z_mean, z_log_var = jax.block_until_ready(cvae_forward(x, eps, params))

    r_recon, r_mean, r_logvar = reference_forward(x, eps, params)
    assert recon.shape == (BATCH, INPUT_DIM)
    assert z_mean.shape == (BATCH, LATENT_DIM)
    assert z_log_var.shape == (BATCH, LATENT_DIM)
    # Encoder path is the same math as the reference (only MXU accumulation order differs);
    # the decoder additionally differs by bf16 rounding of the (z_mean + eps*exp) split,
    # hence the slightly looser reconstruction tolerance.
    assert jnp.allclose(z_mean, r_mean, atol=1e-3, rtol=1e-3)
    assert jnp.allclose(z_log_var, r_logvar, atol=1e-3, rtol=1e-3)
    assert jnp.allclose(recon, r_recon, atol=5e-2, rtol=5e-2)

    print("KERNEL_OK")
</pallas_src>

<mosaic_0001>
module attributes {stable_mosaic.version = 11 : i64} {
  func.func @cvae_kernel(%arg0: i32, %arg1: memref<256x128xf32, #tpu.memory_space<vmem>>, %arg2: memref<256x128xf32, #tpu.memory_space<vmem>>, %arg3: memref<128x128xbf16, #tpu.memory_space<vmem>>, %arg4: memref<1x128xf32, #tpu.memory_space<vmem>>, %arg5: memref<128x128xbf16, #tpu.memory_space<vmem>>, %arg6: memref<1x128xf32, #tpu.memory_space<vmem>>, %arg7: memref<128x128xbf16, #tpu.memory_space<vmem>>, %arg8: memref<1x128xf32, #tpu.memory_space<vmem>>, %arg9: memref<128x128xbf16, #tpu.memory_space<vmem>>, %arg10: memref<1x128xf32, #tpu.memory_space<vmem>>, %arg11: memref<128x128xbf16, #tpu.memory_space<vmem>>, %arg12: memref<1x128xf32, #tpu.memory_space<vmem>>, %arg13: memref<256x128xf32, #tpu.memory_space<vmem>>, %arg14: memref<256x128xf32, #tpu.memory_space<vmem>>) attributes {dimension_semantics = [#tpu.dimension_semantics<parallel>], iteration_bounds = array<i64: 2>, scalar_prefetch = 0 : i64, scratch_operands = 0 : i64, tpu.core_type = #tpu.core_type<tc>, window_params = [{transform_indices = @transform_0, window_bounds = array<i64: 256, 128>}, {transform_indices = @transform_1, window_bounds = array<i64: 256, 128>}, {pipeline_mode = #tpu.pipeline_mode<synchronous>, transform_indices = @transform_2, window_bounds = array<i64: 128, 128>}, {pipeline_mode = #tpu.pipeline_mode<synchronous>, transform_indices = @transform_3, window_bounds = array<i64: 1, 128>}, {pipeline_mode = #tpu.pipeline_mode<synchronous>, transform_indices = @transform_4, window_bounds = array<i64: 128, 128>}, {pipeline_mode = #tpu.pipeline_mode<synchronous>, transform_indices = @transform_5, window_bounds = array<i64: 1, 128>}, {pipeline_mode = #tpu.pipeline_mode<synchronous>, transform_indices = @transform_6, window_bounds = array<i64: 128, 128>}, {pipeline_mode = #tpu.pipeline_mode<synchronous>, transform_indices = @transform_7, window_bounds = array<i64: 1, 128>}, {pipeline_mode = #tpu.pipeline_mode<synchronous>, transform_indices = @transform_8, window_bounds = array<i64: 128, 128>}, {pipeline_mode = #tpu.pipeline_mode<synchronous>, transform_indices = @transform_9, window_bounds = array<i64: 1, 128>}, {pipeline_mode = #tpu.pipeline_mode<synchronous>, transform_indices = @transform_10, window_bounds = array<i64: 128, 128>}, {pipeline_mode = #tpu.pipeline_mode<synchronous>, transform_indices = @transform_11, window_bounds = array<i64: 1, 128>}, {transform_indices = @transform_12, window_bounds = array<i64: 256, 128>}, {transform_indices = @transform_13, window_bounds = array<i64: 256, 128>}]} {
    %c0 = arith.constant 0 : index
    %c0_0 = arith.constant 0 : index
    %0 = vector.load %arg1[%c0, %c0_0] : memref<256x128xf32, #tpu.memory_space<vmem>>, vector<256x128xf32>
    %1 = arith.truncf %0 : vector<256x128xf32> to vector<256x128xbf16>
    %c0_1 = arith.constant 0 : index
    %c0_2 = arith.constant 0 : index
    %2 = vector.load %arg3[%c0_1, %c0_2] : memref<128x128xbf16, #tpu.memory_space<vmem>>, vector<128x128xbf16>
    %cst = arith.constant dense<0.000000e+00> : vector<256x128xf32>
    %3 = tpu.matmul %1, %2, %cst {dimension_numbers = #tpu.dot_dimension_numbers<[1], [0], [0], [1], [0, 0, 1, 1], [], []>} : vector<256x128xbf16>, vector<128x128xbf16>, vector<256x128xf32> -> vector<256x128xf32>
    %c0_3 = arith.constant 0 : index
    %c0_4 = arith.constant 0 : index
    %4 = vector.load %arg4[%c0_3, %c0_4] : memref<1x128xf32, #tpu.memory_space<vmem>>, vector<1x128xf32>
    %5 = vector.broadcast %4 : vector<1x128xf32> to vector<256x128xf32>
    %6 = arith.addf %3, %5 : vector<256x128xf32>
    %cst_5 = arith.constant 0.000000e+00 : f32
    %7 = vector.broadcast %cst_5 : f32 to vector<256x128xf32>
    %8 = arith.maximumf %6, %7 : vector<256x128xf32>
    %9 = arith.truncf %8 : vector<256x128xf32> to vector<256x128xbf16>
    %c0_6 = arith.constant 0 : index
    %c0_7 = arith.constant 0 : index
    %10 = vector.load %arg5[%c0_6, %c0_7] : memref<128x128xbf16, #tpu.memory_space<vmem>>, vector<128x128xbf16>
    %cst_8 = arith.constant dense<0.000000e+00> : vector<256x128xf32>
    %11 = tpu.matmul %9, %10, %cst_8 {dimension_numbers = #tpu.dot_dimension_numbers<[1], [0], [0], [1], [0, 0, 1, 1], [], []>} : vector<256x128xbf16>, vector<128x128xbf16>, vector<256x128xf32> -> vector<256x128xf32>
    %c0_9 = arith.constant 0 : index
    %c0_10 = arith.constant 0 : index
    %12 = vector.load %arg6[%c0_9, %c0_10] : memref<1x128xf32, #tpu.memory_space<vmem>>, vector<1x128xf32>
    %13 = vector.broadcast %12 : vector<1x128xf32> to vector<256x128xf32>
    %14 = arith.addf %11, %13 : vector<256x128xf32>
    %cst_11 = arith.constant 0.000000e+00 : f32
    %15 = vector.broadcast %cst_11 : f32 to vector<256x128xf32>
    %16 = arith.maximumf %14, %15 : vector<256x128xf32>
    %c0_12 = arith.constant 0 : index
    %c0_13 = arith.constant 0 : index
    %17 = vector.load %arg14[%c0_12, %c0_13] : memref<256x128xf32, #tpu.memory_space<vmem>>, vector<256x128xf32>
    tpu.vector_store %arg14[%c0_12, %c0_13], %16 {strides = array<i32>} : memref<256x128xf32, #tpu.memory_space<vmem>>, vector<256x128xf32>,
    %18 = tpu.iota {dimensions = array<i32: 1>} : vector<1x128xi32>
    %c64_i32 = arith.constant 64 : i32
    %19 = vector.broadcast %c64_i32 : i32 to vector<1x128xi32>
    %20 = arith.cmpi slt, %18, %19 : vector<1x128xi32>
    %cst_14 = arith.constant 5.000000e-01 : f32
    %21 = vector.broadcast %cst_14 : f32 to vector<256x128xf32>
    %22 = arith.mulf %21, %16 : vector<256x128xf32>
    %23 = math.exp %22 : vector<256x128xf32>
    %c0_15 = arith.constant 0 : index
    %c0_16 = arith.constant 0 : index
    %24 = vector.load %arg2[%c0_15, %c0_16] : memref<256x128xf32, #tpu.memory_space<vmem>>, vector<256x128xf32>
    %25 = arith.mulf %23, %24 : vector<256x128xf32>
    %26 = vector.shape_cast %20 : vector<1x128xi1> to vector<1x128xi1>
    %27 = vector.broadcast %26 : vector<1x128xi1> to vector<256x128xi1>
    %28 = arith.select %27, %16, %25 : vector<256x128xi1>, vector<256x128xf32>
    %29 = arith.truncf %28 : vector<256x128xf32> to vector<256x128xbf16>
    %c0_17 = arith.constant 0 : index
    %c0_18 = arith.constant 0 : index
    %30 = vector.load %arg7[%c0_17, %c0_18] : memref<128x128xbf16, #tpu.memory_space<vmem>>, vector<128x128xbf16>
    %cst_19 = arith.constant dense<0.000000e+00> : vector<256x128xf32>
    %31 = tpu.matmul %29, %30, %cst_19 {dimension_numbers = #tpu.dot_dimension_numbers<[1], [0], [0], [1], [0, 0, 1, 1], [], []>} : vector<256x128xbf16>, vector<128x128xbf16>, vector<256x128xf32> -> vector<256x128xf32>
    %c0_20 = arith.constant 0 : index
    %c0_21 = arith.constant 0 : index
    %32 = vector.load %arg8[%c0_20, %c0_21] : memref<1x128xf32, #tpu.memory_space<vmem>>, vector<1x128xf32>
    %33 = vector.broadcast %32 : vector<1x128xf32> to vector<256x128xf32>
    %34 = arith.addf %31, %33 : vector<256x128xf32>
    %cst_22 = arith.constant 0.000000e+00 : f32
    %35 = vector.broadcast %cst_22 : f32 to vector<256x128xf32>
    %36 = arith.maximumf %34, %35 : vector<256x128xf32>
    %37 = arith.truncf %36 : vector<256x128xf32> to vector<256x128xbf16>
    %c0_23 = arith.constant 0 : index
    %c0_24 = arith.constant 0 : index
    %38 = vector.load %arg9[%c0_23, %c0_24] : memref<128x128xbf16, #tpu.memory_space<vmem>>, vector<128x128xbf16>
    %cst_25 = arith.constant dense<0.000000e+00> : vector<256x128xf32>
    %39 = tpu.matmul %37, %38, %cst_25 {dimension_numbers = #tpu.dot_dimension_numbers<[1], [0], [0], [1], [0, 0, 1, 1], [], []>} : vector<256x128xbf16>, vector<128x128xbf16>, vector<256x128xf32> -> vector<256x128xf32>
    %c0_26 = arith.constant 0 : index
    %c0_27 = arith.constant 0 : index
    %40 = vector.load %arg10[%c0_26, %c0_27] : memref<1x128xf32, #tpu.memory_space<vmem>>, vector<1x128xf32>
    %41 = vector.broadcast %40 : vector<1x128xf32> to vector<256x128xf32>
    %42 = arith.addf %39, %41 : vector<256x128xf32>
    %cst_28 = arith.constant 0.000000e+00 : f32
    %43 = vector.broadcast %cst_28 : f32 to vector<256x128xf32>
    %44 = arith.maximumf %42, %43 : vector<256x128xf32>
    %45 = arith.truncf %44 : vector<256x128xf32> to vector<256x128xbf16>
    %c0_29 = arith.constant 0 : index
    %c0_30 = arith.constant 0 : index
    %46 = vector.load %arg11[%c0_29, %c0_30] : memref<128x128xbf16, #tpu.memory_space<vmem>>, vector<128x128xbf16>
    %cst_31 = arith.constant dense<0.000000e+00> : vector<256x128xf32>
    %47 = tpu.matmul %45, %46, %cst_31 {dimension_numbers = #tpu.dot_dimension_numbers<[1], [0], [0], [1], [0, 0, 1, 1], [], []>} : vector<256x128xbf16>, vector<128x128xbf16>, vector<256x128xf32> -> vector<256x128xf32>
    %c0_32 = arith.constant 0 : index
    %c0_33 = arith.constant 0 : index
    %48 = vector.load %arg12[%c0_32, %c0_33] : memref<1x128xf32, #tpu.memory_space<vmem>>, vector<1x128xf32>
    %49 = vector.broadcast %48 : vector<1x128xf32> to vector<256x128xf32>
    %50 = arith.addf %47, %49 : vector<256x128xf32>
    %c0_34 = arith.constant 0 : index
    %c0_35 = arith.constant 0 : index
    %51 = vector.load %arg13[%c0_34, %c0_35] : memref<256x128xf32, #tpu.memory_space<vmem>>, vector<256x128xf32>
    tpu.vector_store %arg13[%c0_34, %c0_35], %50 {strides = array<i32>} : memref<256x128xf32, #tpu.memory_space<vmem>>, vector<256x128xf32>,
    return
  }
  func.func @transform_0(%arg0: i32) -> (i32, i32) {
    %c0_i32 = arith.constant 0 : i32
    %c0_i32_0 = arith.constant 0 : i32
    return %arg0, %c0_i32 : i32, i32
  }
  func.func @transform_1(%arg0: i32) -> (i32, i32) {
    %c0_i32 = arith.constant 0 : i32
    %c0_i32_0 = arith.constant 0 : i32
    return %arg0, %c0_i32 : i32, i32
  }
  func.func @transform_2(%arg0: i32) -> (i32, i32) {
    %c0_i32 = arith.constant 0 : i32
    %c0_i32_0 = arith.constant 0 : i32
    %c0_i32_1 = arith.constant 0 : i32
    return %c0_i32, %c0_i32_0 : i32, i32
  }
  func.func @transform_3(%arg0: i32) -> (i32, i32) {
    %c0_i32 = arith.constant 0 : i32
    %c0_i32_0 = arith.constant 0 : i32
    %c0_i32_1 = arith.constant 0 : i32
    return %c0_i32, %c0_i32_0 : i32, i32
  }
  func.func @transform_4(%arg0: i32) -> (i32, i32) {
    %c0_i32 = arith.constant 0 : i32
    %c0_i32_0 = arith.constant 0 : i32
    %c0_i32_1 = arith.constant 0 : i32
    return %c0_i32, %c0_i32_0 : i32, i32
  }
  func.func @transform_5(%arg0: i32) -> (i32, i32) {
    %c0_i32 = arith.constant 0 : i32
    %c0_i32_0 = arith.constant 0 : i32
    %c0_i32_1 = arith.constant 0 : i32
    return %c0_i32, %c0_i32_0 : i32, i32
  }
  func.func @transform_6(%arg0: i32) -> (i32, i32) {
    %c0_i32 = arith.constant 0 : i32
    %c0_i32_0 = arith.constant 0 : i32
    %c0_i32_1 = arith.constant 0 : i32
    return %c0_i32, %c0_i32_0 : i32, i32
  }
  func.func @transform_7(%arg0: i32) -> (i32, i32) {
    %c0_i32 = arith.constant 0 : i32
    %c0_i32_0 = arith.constant 0 : i32
    %c0_i32_1 = arith.constant 0 : i32
    return %c0_i32, %c0_i32_0 : i32, i32
  }
  func.func @transform_8(%arg0: i32) -> (i32, i32) {
    %c0_i32 = arith.constant 0 : i32
    %c0_i32_0 = arith.constant 0 : i32
    %c0_i32_1 = arith.constant 0 : i32
    return %c0_i32, %c0_i32_0 : i32, i32
  }
  func.func @transform_9(%arg0: i32) -> (i32, i32) {
    %c0_i32 = arith.constant 0 : i32
    %c0_i32_0 = arith.constant 0 : i32
    %c0_i32_1 = arith.constant 0 : i32
    return %c0_i32, %c0_i32_0 : i32, i32
  }
  func.func @transform_10(%arg0: i32) -> (i32, i32) {
    %c0_i32 = arith.constant 0 : i32
    %c0_i32_0 = arith.constant 0 : i32
    %c0_i32_1 = arith.constant 0 : i32
    return %c0_i32, %c0_i32_0 : i32, i32
  }
  func.func @transform_11(%arg0: i32) -> (i32, i32) {
    %c0_i32 = arith.constant 0 : i32
    %c0_i32_0 = arith.constant 0 : i32
    %c0_i32_1 = arith.constant 0 : i32
    return %c0_i32, %c0_i32_0 : i32, i32
  }
  func.func @transform_12(%arg0: i32) -> (i32, i32) {
    %c0_i32 = arith.constant 0 : i32
    %c0_i32_0 = arith.constant 0 : i32
    return %arg0, %c0_i32 : i32, i32
  }
  func.func @transform_13(%arg0: i32) -> (i32, i32) {
    %c0_i32 = arith.constant 0 : i32
    %c0_i32_0 = arith.constant 0 : i32
    return %arg0, %c0_i32 : i32, i32
  }
}

</mosaic_0001>

<llo_original>
// kernel: tpu_custom_call.1
$region0: #{tpu_custom_call.1}
  #allocation0 [shape = 'u32[]', space=smem, size = 0x4, offset = 0x4, fixed_abs, tag = 'smem constant byte address 0x4 - core index']
  #allocation1 [shape = 'u32[144,128]{1,0:T(1,128)}', space=vmem, size = 0x12000, scoped, tag = 'internal scratch']
  %s0 = inlined_call_operand.hbm [shape: f32[512,128], index: 0, kind: input, shape index: {}]
  %s1 = inlined_call_operand.hbm [shape: f32[512,128], index: 1, kind: input, shape index: {}]
  %s2 = inlined_call_operand.hbm [shape: bf16[128,128], index: 2, kind: input, shape index: {}]
  %s3 = inlined_call_operand.vmem [shape: f32[1,128], index: 3, kind: input, shape index: {}]
  %s4 = inlined_call_operand.hbm [shape: bf16[128,128], index: 4, kind: input, shape index: {}]
  %s5 = inlined_call_operand.vmem [shape: f32[1,128], index: 5, kind: input, shape index: {}]
  %s6 = inlined_call_operand.hbm [shape: bf16[128,128], index: 6, kind: input, shape index: {}]
  %s7 = inlined_call_operand.vmem [shape: f32[1,128], index: 7, kind: input, shape index: {}]
  %s8 = inlined_call_operand.hbm [shape: bf16[128,128], index: 8, kind: input, shape index: {}]
  %s9 = inlined_call_operand.vmem [shape: f32[1,128], index: 9, kind: input, shape index: {}]
  %s10 = inlined_call_operand.hbm [shape: bf16[128,128], index: 10, kind: input, shape index: {}]
  %s11 = inlined_call_operand.vmem [shape: f32[1,128], index: 11, kind: input, shape index: {}]
  %s12 = inlined_call_operand.hbm [shape: f32[512,128], index: 12, kind: output, shape index: {0}]
  %s13 = inlined_call_operand.hbm [shape: f32[512,128], index: 13, kind: output, shape index: {1}]
  %14 = xla_tuple %s12, %s13
  %s15 = sld [smem:[#allocation0]]
  $region117: #{tpu_custom_call.1} parent=0
    _
  %s17 = ssub.s32 1, %s15
  %s18 = scalar_select 0, %s17, %s15
  $region1: #{tpu_custom_call.1} parent=0
    #allocation2 [shape = 'u8[262144]{0}', space=vmem, size = 0x40000, scoped, tag = 'input window, operand 0']
    #allocation3 [shape = 's32[2]{0}', space=sflag, size = 0x8, scoped, tag = 'scoped memory for tpu_custom_call.1']
    #allocation4 [shape = 's32[2]{0}', space=sflag, size = 0x8, scoped, tag = 'scoped memory for tpu_custom_call.1']
    #allocation5 [shape = 'u8[262144]{0}', space=vmem, size = 0x40000, scoped, tag = 'input window, operand 1']
    #allocation6 [shape = 's32[2]{0}', space=sflag, size = 0x8, scoped, tag = 'scoped memory for tpu_custom_call.1']
    #allocation7 [shape = 'u8[32768]{0}', space=vmem, size = 0x8000, scoped, tag = 'input window, operand 2, single buffered']
    #allocation8 [shape = 'u8[32768]{0}', space=vmem, size = 0x8000, scoped, tag = 'input window, operand 4, single buffered']
    #allocation9 [shape = 's32[1]{0}', space=sflag, size = 0x4, scoped, tag = 'scoped memory for tpu_custom_call.1']
    #allocation10 [shape = 'u8[32768]{0}', space=vmem, size = 0x8000, scoped, tag = 'input window, operand 6, single buffered']
    #allocation11 [shape = 'u8[32768]{0}', space=vmem, size = 0x8000, scoped, tag = 'input window, operand 8, single buffered']
    #allocation12 [shape = 's32[1]{0}', space=sflag, size = 0x4, scoped, tag = 'scoped memory for tpu_custom_call.1']
    #allocation13 [shape = 'u8[32768]{0}', space=vmem, size = 0x8000, scoped, tag = 'input window, operand 10, single buffered']
    #allocation14 [shape = 'u8[262144]{0}', space=vmem, size = 0x40000, scoped, tag = 'output window, operand 0']
    #allocation15 [shape = 'u8[262144]{0}', space=vmem, size = 0x40000, scoped, tag = 'output window, operand 1']
    #allocation16 [shape = 's32[2]{0}', space=sflag, size = 0x8, scoped, tag = 'scoped memory for tpu_custom_call.1']
    %19 = vsyncpa [#allocation3], 0
    %s20 = scalar_lea.sflag [#allocation3], 1
    %21 = vsyncpa %s20, 0
    %22 = vsyncpa [#allocation6], 0
    %s23 = scalar_lea.sflag [#allocation6], 1
    %24 = vsyncpa %s23, 0
    %25 = vsyncpa [#allocation9], 0
    %26 = vsyncpa [#allocation12], 0
    %27 = vsyncpa [#allocation4], 0
    %s28 = scalar_lea.sflag [#allocation4], 1
    %29 = vsyncpa %s28, 0
    %30 = vsyncpa [#allocation16], 0
    %s31 = scalar_lea.sflag [#allocation16], 1
    %32 = vsyncpa %s31, 0
    loop: start=0, step=1, limit=4
    $region2: #{tpu_custom_call.1} parent=1 // loop_pre_header
      _
    $region3: #{tpu_custom_call.1} parent=1 // loop_header
      %s34 = sphi 0, %s38
      %p35 = scmp.ge.s32.totalorder %s34, 4
      %s44 = sphi 0, %s46
      %s47 = sphi 0, %s44
      %s48 = sphi 0, %s47
      %s64 = sphi 0, %s48
      %s70 = sphi 0, %s72
      %s73 = sphi 0, %s70
      %s74 = sphi 0, %s73
      %s90 = sphi 0, %s74
      %s94 = sphi 0, %s94
      %s96 = sphi 0, %s94
      %s97 = sphi 0, %s96
      %s111 = sphi 0, %s97
      %s115 = sphi 0, %s115
      %s117 = sphi 0, %s115
      %s118 = sphi 0, %s117
      %s132 = sphi 0, %s118
      %s136 = sphi 0, %s136
      %s138 = sphi 0, %s136
      %s139 = sphi 0, %s138
      %s153 = sphi 0, %s139
      %s157 = sphi 0, %s157
      %s159 = sphi 0, %s157
      %s160 = sphi 0, %s159
      %s174 = sphi 0, %s160
      %s178 = sphi 0, %s178
      %s180 = sphi 0, %s178
      %s181 = sphi 0, %s180
      %s195 = sphi 0, %s181
      %s199 = sphi 0, %s199
      %s201 = sphi 0, %s199
      %s202 = sphi 0, %s201
      %s216 = sphi 0, %s202
      %s220 = sphi 0, %s220
      %s222 = sphi 0, %s220
      %s223 = sphi 0, %s222
      %s237 = sphi 0, %s223
      %s241 = sphi 0, %s241
      %s243 = sphi 0, %s241
      %s244 = sphi 0, %s243
      %s258 = sphi 0, %s244
      %s262 = sphi 0, %s262
      %s264 = sphi 0, %s262
      %s265 = sphi 0, %s264
      %s279 = sphi 0, %s265
      %s283 = sphi 0, %s283
      %s285 = sphi 0, %s283
      %s286 = sphi 0, %s285
      %s300 = sphi 0, %s286
      %s306 = sphi 0, %s308
      %s309 = sphi 0, %s306
      %s310 = sphi 0, %s309
      %s326 = sphi 0, %s310
      %s332 = sphi 0, %s334
      %s335 = sphi 0, %s332
      %s336 = sphi 0, %s335
      %s352 = sphi 0, %s336
    $region4: #{tpu_custom_call.1} parent=1 // loop_header_branch
      %37 = sbr.rel (%p35) target = $region8
    $region5: #{tpu_custom_call.1} parent=1 // loop_body
      %s39 = ssub.s32 %s34, 1
      %s40 = ssub.s32 %s34, 2
      %s41 = sadd.s32 %s34, 1
      %s42 = ssub.s32 %s34, %s41
      %p43 = scmp.eq.s32.totalorder %s42, 0
      %s45 = sadd.s32 %s44, 1
      %s46 = scalar_select %p43, %s44, %s45
      %p49 = pneg %p43
      %p50 = scmp.eq.s32.totalorder %s34, 1
      %p51 = por %p49, %p50
      %p52 = scmp.ne.s32.totalorder %s44, %s47
      %p53 = scmp.eq.s32.totalorder %s34, 0
      %p54 = por %p52, %p53
      %p55 = scmp.ne.s32.totalorder %s44, %s47
      %p56 = scmp.eq.s32.totalorder %s39, 1
      %p57 = por %p55, %p56
      %p58 = scmp.ne.s32.totalorder %s47, %s48
      %p59 = scmp.eq.s32.totalorder %s39, 0
      %p60 = por %p58, %p59
      %p61 = scmp.ne.s32.totalorder %s47, %s48
      %p62 = scmp.eq.s32.totalorder %s40, 1
      %p63 = por %p61, %p62
      %p65 = scmp.ne.s32.totalorder %s48, %s64
      %p66 = scmp.eq.s32.totalorder %s40, 0
      %p67 = por %p65, %p66
      %s68 = ssub.s32 %s34, %s41
      %p69 = scmp.eq.s32.totalorder %s68, 0
      %s71 = sadd.s32 %s70, 1
      %s72 = scalar_select %p69, %s70, %s71
      %p75 = pneg %p69
      %p76 = scmp.eq.s32.totalorder %s34, 1
      %p77 = por %p75, %p76
      %p78 = scmp.ne.s32.totalorder %s70, %s73
      %p79 = scmp.eq.s32.totalorder %s34, 0
      %p80 = por %p78, %p79
      %p81 = scmp.ne.s32.totalorder %s70, %s73
      %p82 = scmp.eq.s32.totalorder %s39, 1
      %p83 = por %p81, %p82
      %p84 = scmp.ne.s32.totalorder %s73, %s74
      %p85 = scmp.eq.s32.totalorder %s39, 0
      %p86 = por %p84, %p85
      %p87 = scmp.ne.s32.totalorder %s73, %s74
      %p88 = scmp.eq.s32.totalorder %s40, 1
      %p89 = por %p87, %p88
      %p91 = scmp.ne.s32.totalorder %s74, %s90
      %p92 = scmp.eq.s32.totalorder %s40, 0
      %p93 = por %p91, %p92
      %s95 = sadd.s32 %s94, 1
      %p98 = scmp.eq.s32.totalorder %s34, 1
      %p99 = scmp.ne.s32.totalorder %s94, %s96
      %p100 = scmp.eq.s32.totalorder %s34, 0
      %p101 = por %p99, %p100
      %p102 = scmp.ne.s32.totalorder %s94, %s96
      %p103 = scmp.eq.s32.totalorder %s39, 1
      %p104 = por %p102, %p103
      %p105 = scmp.ne.s32.totalorder %s96, %s97
      %p106 = scmp.eq.s32.totalorder %s39, 0
      %p107 = por %p105, %p106
      %p108 = scmp.ne.s32.totalorder %s96, %s97
      %p109 = scmp.eq.s32.totalorder %s40, 1
      %p110 = por %p108, %p109
      %p112 = scmp.ne.s32.totalorder %s97, %s111
      %p113 = scmp.eq.s32.totalorder %s40, 0
      %p114 = por %p112, %p113
      %s116 = sadd.s32 %s115, 1
      %p119 = scmp.eq.s32.totalorder %s34, 1
      %p120 = scmp.ne.s32.totalorder %s115, %s117
      %p121 = scmp.eq.s32.totalorder %s34, 0
      %p122 = por %p120, %p121
      %p123 = scmp.ne.s32.totalorder %s115, %s117
      %p124 = scmp.eq.s32.totalorder %s39, 1
      %p125 = por %p123, %p124
      %p126 = scmp.ne.s32.totalorder %s117, %s118
      %p127 = scmp.eq.s32.totalorder %s39, 0
      %p128 = por %p126, %p127
      %p129 = scmp.ne.s32.totalorder %s117, %s118
      %p130 = scmp.eq.s32.totalorder %s40, 1
      %p131 = por %p129, %p130
      %p133 = scmp.ne.s32.totalorder %s118, %s132
      %p134 = scmp.eq.s32.totalorder %s40, 0
      %p135 = por %p133, %p134
      %s137 = sadd.s32 %s136, 1
      %p140 = scmp.eq.s32.totalorder %s34, 1
      %p141 = scmp.ne.s32.totalorder %s136, %s138
      %p142 = scmp.eq.s32.totalorder %s34, 0
      %p143 = por %p141, %p142
      %p144 = scmp.ne.s32.totalorder %s136, %s138
      %p145 = scmp.eq.s32.totalorder %s39, 1
      %p146 = por %p144, %p145
      %p147 = scmp.ne.s32.totalorder %s138, %s139
      %p148 = scmp.eq.s32.totalorder %s39, 0
      %p149 = por %p147, %p148
      %p150 = scmp.ne.s32.totalorder %s138, %s139
      %p151 = scmp.eq.s32.totalorder %s40, 1
      %p152 = por %p150, %p151
      %p154 = scmp.ne.s32.totalorder %s139, %s153
      %p155 = scmp.eq.s32.totalorder %s40, 0
      %p156 = por %p154, %p155
      %s158 = sadd.s32 %s157, 1
      %p161 = scmp.eq.s32.totalorder %s34, 1
      %p162 = scmp.ne.s32.totalorder %s157, %s159
      %p163 = scmp.eq.s32.totalorder %s34, 0
      %p164 = por %p162, %p163
      %p165 = scmp.ne.s32.totalorder %s157, %s159
      %p166 = scmp.eq.s32.totalorder %s39, 1
      %p167 = por %p165, %p166
      %p168 = scmp.ne.s32.totalorder %s159, %s160
      %p169 = scmp.eq.s32.totalorder %s39, 0
      %p170 = por %p168, %p169
      %p171 = scmp.ne.s32.totalorder %s159, %s160
      %p172 = scmp.eq.s32.totalorder %s40, 1
      %p173 = por %p171, %p172
      %p175 = scmp.ne.s32.totalorder %s160, %s174
      %p176 = scmp.eq.s32.totalorder %s40, 0
      %p177 = por %p175, %p176
      %s179 = sadd.s32 %s178, 1
      %p182 = scmp.eq.s32.totalorder %s34, 1
      %p183 = scmp.ne.s32.totalorder %s178, %s180
      %p184 = scmp.eq.s32.totalorder %s34, 0
      %p185 = por %p183, %p184
      %p186 = scmp.ne.s32.totalorder %s178, %s180
      %p187 = scmp.eq.s32.totalorder %s39, 1
      %p188 = por %p186, %p187
      %p189 = scmp.ne.s32.totalorder %s180, %s181
      %p190 = scmp.eq.s32.totalorder %s39, 0
      %p191 = por %p189, %p190
      %p192 = scmp.ne.s32.totalorder %s180, %s181
      %p193 = scmp.eq.s32.totalorder %s40, 1
      %p194 = por %p192, %p193
      %p196 = scmp.ne.s32.totalorder %s181, %s195
      %p197 = scmp.eq.s32.totalorder %s40, 0
      %p198 = por %p196, %p197
      %s200 = sadd.s32 %s199, 1
      %p203 = scmp.eq.s32.totalorder %s34, 1
      %p204 = scmp.ne.s32.totalorder %s199, %s201
      %p205 = scmp.eq.s32.totalorder %s34, 0
      %p206 = por %p204, %p205
      %p207 = scmp.ne.s32.totalorder %s199, %s201
      %p208 = scmp.eq.s32.totalorder %s39, 1
      %p209 = por %p207, %p208
      %p210 = scmp.ne.s32.totalorder %s201, %s202
      %p211 = scmp.eq.s32.totalorder %s39, 0
      %p212 = por %p210, %p211
      %p213 = scmp.ne.s32.totalorder %s201, %s202
      %p214 = scmp.eq.s32.totalorder %s40, 1
      %p215 = por %p213, %p214
      %p217 = scmp.ne.s32.totalorder %s202, %s216
      %p218 = scmp.eq.s32.totalorder %s40, 0
      %p219 = por %p217, %p218
      %s221 = sadd.s32 %s220, 1
      %p224 = scmp.eq.s32.totalorder %s34, 1
      %p225 = scmp.ne.s32.totalorder %s220, %s222
      %p226 = scmp.eq.s32.totalorder %s34, 0
      %p227 = por %p225, %p226
      %p228 = scmp.ne.s32.totalorder %s220, %s222
      %p229 = scmp.eq.s32.totalorder %s39, 1
      %p230 = por %p228, %p229
      %p231 = scmp.ne.s32.totalorder %s222, %s223
      %p232 = scmp.eq.s32.totalorder %s39, 0
      %p233 = por %p231, %p232
      %p234 = scmp.ne.s32.totalorder %s222, %s223
      %p235 = scmp.eq.s32.totalorder %s40, 1
      %p236 = por %p234, %p235
      %p238 = scmp.ne.s32.totalorder %s223, %s237
      %p239 = scmp.eq.s32.totalorder %s40, 0
      %p240 = por %p238, %p239
      %s242 = sadd.s32 %s241, 1
      %p245 = scmp.eq.s32.totalorder %s34, 1
      %p246 = scmp.ne.s32.totalorder %s241, %s243
      %p247 = scmp.eq.s32.totalorder %s34, 0
      %p248 = por %p246, %p247
      %p249 = scmp.ne.s32.totalorder %s241, %s243
      %p250 = scmp.eq.s32.totalorder %s39, 1
      %p251 = por %p249, %p250
      %p252 = scmp.ne.s32.totalorder %s243, %s244
      %p253 = scmp.eq.s32.totalorder %s39, 0
      %p254 = por %p252, %p253
      %p255 = scmp.ne.s32.totalorder %s243, %s244
      %p256 = scmp.eq.s32.totalorder %s40, 1
      %p257 = por %p255, %p256
      %p259 = scmp.ne.s32.totalorder %s244, %s258
      %p260 = scmp.eq.s32.totalorder %s40, 0
      %p261 = por %p259, %p260
      %s263 = sadd.s32 %s262, 1
      %p266 = scmp.eq.s32.totalorder %s34, 1
      %p267 = scmp.ne.s32.totalorder %s262, %s264
      %p268 = scmp.eq.s32.totalorder %s34, 0
      %p269 = por %p267, %p268
      %p270 = scmp.ne.s32.totalorder %s262, %s264
      %p271 = scmp.eq.s32.totalorder %s39, 1
      %p272 = por %p270, %p271
      %p273 = scmp.ne.s32.totalorder %s264, %s265
      %p274 = scmp.eq.s32.totalorder %s39, 0
      %p275 = por %p273, %p274
      %p276 = scmp.ne.s32.totalorder %s264, %s265
      %p277 = scmp.eq.s32.totalorder %s40, 1
      %p278 = por %p276, %p277
      %p280 = scmp.ne.s32.totalorder %s265, %s279
      %p281 = scmp.eq.s32.totalorder %s40, 0
      %p282 = por %p280, %p281
      %s284 = sadd.s32 %s283, 1
      %p287 = scmp.eq.s32.totalorder %s34, 1
      %p288 = scmp.ne.s32.totalorder %s283, %s285
      %p289 = scmp.eq.s32.totalorder %s34, 0
      %p290 = por %p288, %p289
      %p291 = scmp.ne.s32.totalorder %s283, %s285
      %p292 = scmp.eq.s32.totalorder %s39, 1
      %p293 = por %p291, %p292
      %p294 = scmp.ne.s32.totalorder %s285, %s286
      %p295 = scmp.eq.s32.totalorder %s39, 0
      %p296 = por %p294, %p295
      %p297 = scmp.ne.s32.totalorder %s285, %s286
      %p298 = scmp.eq.s32.totalorder %s40, 1
      %p299 = por %p297, %p298
      %p301 = scmp.ne.s32.totalorder %s286, %s300
      %p302 = scmp.eq.s32.totalorder %s40, 0
      %p303 = por %p301, %p302
      %s304 = ssub.s32 %s34, %s41
      %p305 = scmp.eq.s32.totalorder %s304, 0
      %s307 = sadd.s32 %s306, 1
      %s308 = scalar_select %p305, %s306, %s307
      %p311 = pneg %p305
      %p312 = scmp.eq.s32.totalorder %s34, 1
      %p313 = por %p311, %p312
      %p314 = scmp.ne.s32.totalorder %s306, %s309
      %p315 = scmp.eq.s32.totalorder %s34, 0
      %p316 = por %p314, %p315
      %p317 = scmp.ne.s32.totalorder %s306, %s309
      %p318 = scmp.eq.s32.totalorder %s39, 1
      %p319 = por %p317, %p318
      %p320 = scmp.ne.s32.totalorder %s309, %s310
      %p321 = scmp.eq.s32.totalorder %s39, 0
      %p322 = por %p320, %p321
      %p323 = scmp.ne.s32.totalorder %s309, %s310
      %p324 = scmp.eq.s32.totalorder %s40, 1
      %p325 = por %p323, %p324
      %p327 = scmp.ne.s32.totalorder %s310, %s326
      %p328 = scmp.eq.s32.totalorder %s40, 0
      %p329 = por %p327, %p328
      %s330 = ssub.s32 %s34, %s41
      %p331 = scmp.eq.s32.totalorder %s330, 0
      %s333 = sadd.s32 %s332, 1
      %s334 = scalar_select %p331, %s332, %s333
      %p337 = pneg %p331
      %p338 = scmp.eq.s32.totalorder %s34, 1
      %p339 = por %p337, %p338
      %p340 = scmp.ne.s32.totalorder %s332, %s335
      %p341 = scmp.eq.s32.totalorder %s34, 0
      %p342 = por %p340, %p341
      %p343 = scmp.ne.s32.totalorder %s332, %s335
      %p344 = scmp.eq.s32.totalorder %s39, 1
      %p345 = por %p343, %p344
      %p346 = scmp.ne.s32.totalorder %s335, %s336
      %p347 = scmp.eq.s32.totalorder %s39, 0
      %p348 = por %p346, %p347
      %p349 = scmp.ne.s32.totalorder %s335, %s336
      %p350 = scmp.eq.s32.totalorder %s40, 1
      %p351 = por %p349, %p350
      %p353 = scmp.ne.s32.totalorder %s336, %s352
      %p354 = scmp.eq.s32.totalorder %s40, 0
      %p355 = por %p353, %p354
      %p356 = scmp.le.s32.totalorder 1, %s34
      %p357 = scmp.lt.s32.totalorder %s34, 3
      %p358 = pnand %p356, %p357
      %p359 = pneg %p358
      // Predicated region
      $region9: #{tpu_custom_call.1} parent=5 // pred_check
        _
      $region10: #{tpu_custom_call.1} parent=5 // pred_check_branch
        %361 = sbr.rel (%p358) target = $region12
      $region11: #{tpu_custom_call.1} parent=5 // pred_region
        %s362 = ssub.s32 %s34, 1
        // Predicated region
        $region13: #{tpu_custom_call.1} parent=11 // pred_check
          %p363 = pneg %p107
        $region14: #{tpu_custom_call.1} parent=11 // pred_check_branch
          %365 = sbr.rel (%p363) target = $region16
        $region15: #{tpu_custom_call.1} parent=11 // pred_region
          %s367 = ssub.s32 1024, 1024
          %368 = vsyncadd [#allocation6], %s367
          %s369 = sshll.u32 [#allocation7], 4
          %s370 = int_to_ptr.vmem [resolvable:$true] %s369
          %375 = dma.hbm_to_vmem [thread:$0]  %s2, 1024, %s370, [#allocation6], 64, 64, 4
        $region16: #{tpu_custom_call.1} parent=11 // pred_fallthru
          _
        // Predicated region
        $region17: #{tpu_custom_call.1} parent=11 // pred_check
          %p376 = pneg %p128
        $region18: #{tpu_custom_call.1} parent=11 // pred_check_branch
          %378 = sbr.rel (%p376) target = $region20
        $region19: #{tpu_custom_call.1} parent=11 // pred_region
          _
        $region20: #{tpu_custom_call.1} parent=11 // pred_fallthru
          _
        // Predicated region
        $region21: #{tpu_custom_call.1} parent=11 // pred_check
          %p379 = pneg %p149
        $region22: #{tpu_custom_call.1} parent=11 // pred_check_branch
          %381 = sbr.rel (%p379) target = $region24
        $region23: #{tpu_custom_call.1} parent=11 // pred_region
          %s383 = ssub.s32 1024, 1024
          %384 = vsyncadd [#allocation9], %s383
          %s385 = sshll.u32 [#allocation8], 4
          %s386 = int_to_ptr.vmem [resolvable:$true] %s385
          %391 = dma.hbm_to_vmem [thread:$0]  %s4, 1024, %s386, [#allocation9], 64, 64, 4
        $region24: #{tpu_custom_call.1} parent=11 // pred_fallthru
          _
        // Predicated region
        $region25: #{tpu_custom_call.1} parent=11 // pred_check
          %p392 = pneg %p170
        $region26: #{tpu_custom_call.1} parent=11 // pred_check_branch
          %394 = sbr.rel (%p392) target = $region28
        $region27: #{tpu_custom_call.1} parent=11 // pred_region
          _
        $region28: #{tpu_custom_call.1} parent=11 // pred_fallthru
          _
        // Predicated region
        $region29: #{tpu_custom_call.1} parent=11 // pred_check
          %p395 = pneg %p191
        $region30: #{tpu_custom_call.1} parent=11 // pred_check_branch
          %397 = sbr.rel (%p395) target = $region32
        $region31: #{tpu_custom_call.1} parent=11 // pred_region
          %s399 = ssub.s32 1024, 1024
          %400 = vsyncadd [#allocation9], %s399
          %s401 = sshll.u32 [#allocation10], 4
          %s402 = int_to_ptr.vmem [resolvable:$true] %s401
          %407 = dma.hbm_to_vmem [thread:$0]  %s6, 1024, %s402, [#allocation9], 64, 64, 4
        $region32: #{tpu_custom_call.1} parent=11 // pred_fallthru
          _
        // Predicated region
        $region33: #{tpu_custom_call.1} parent=11 // pred_check
          %p408 = pneg %p212
        $region34: #{tpu_custom_call.1} parent=11 // pred_check_branch
          %410 = sbr.rel (%p408) target = $region36
        $region35: #{tpu_custom_call.1} parent=11 // pred_region
          _
        $region36: #{tpu_custom_call.1} parent=11 // pred_fallthru
          _
        // Predicated region
        $region37: #{tpu_custom_call.1} parent=11 // pred_check
          %p411 = pneg %p233
        $region38: #{tpu_custom_call.1} parent=11 // pred_check_branch
          %413 = sbr.rel (%p411) target = $region40
        $region39: #{tpu_custom_call.1} parent=11 // pred_region
          %s415 = ssub.s32 1024, 1024
          %416 = vsyncadd [#allocation12], %s415
          %s417 = sshll.u32 [#allocation11], 4
          %s418 = int_to_ptr.vmem [resolvable:$true] %s417
          %423 = dma.hbm_to_vmem [thread:$0]  %s8, 1024, %s418, [#allocation12], 64, 64, 4
        $region40: #{tpu_custom_call.1} parent=11 // pred_fallthru
          _
        // Predicated region
        $region41: #{tpu_custom_call.1} parent=11 // pred_check
          %p424 = pneg %p254
        $region42: #{tpu_custom_call.1} parent=11 // pred_check_branch
          %426 = sbr.rel (%p424) target = $region44
        $region43: #{tpu_custom_call.1} parent=11 // pred_region
          _
        $region44: #{tpu_custom_call.1} parent=11 // pred_fallthru
          _
        // Predicated region
        $region45: #{tpu_custom_call.1} parent=11 // pred_check
          %p427 = pneg %p275
        $region46: #{tpu_custom_call.1} parent=11 // pred_check_branch
          %429 = sbr.rel (%p427) target = $region48
        $region47: #{tpu_custom_call.1} parent=11 // pred_region
          %s431 = ssub.s32 1024, 1024
          %432 = vsyncadd [#allocation12], %s431
          %s433 = sshll.u32 [#allocation13], 4
          %s434 = int_to_ptr.vmem [resolvable:$true] %s433
          %439 = dma.hbm_to_vmem [thread:$0]  %s10, 1024, %s434, [#allocation12], 64, 64, 4
        $region48: #{tpu_custom_call.1} parent=11 // pred_fallthru
          _
        // Predicated region
        $region49: #{tpu_custom_call.1} parent=11 // pred_check
          %p440 = pneg %p296
        $region50: #{tpu_custom_call.1} parent=11 // pred_check_branch
          %442 = sbr.rel (%p440) target = $region52
        $region51: #{tpu_custom_call.1} parent=11 // pred_region
          _
        $region52: #{tpu_custom_call.1} parent=11 // pred_fallthru
          _
      $region12: #{tpu_custom_call.1} parent=5 // pred_fallthru
        _
      %p443 = scmp.lt.s32.totalorder %s34, 2
      // Predicated region
      $region53: #{tpu_custom_call.1} parent=5 // pred_check
        %p444 = pneg %p443
      $region54: #{tpu_custom_call.1} parent=5 // pred_check_branch
        %446 = sbr.rel (%p444) target = $region56
      $region55: #{tpu_custom_call.1} parent=5 // pred_region
        // Predicated region
        $region57: #{tpu_custom_call.1} parent=55 // pred_check
          %p447 = pneg %p54
        $region58: #{tpu_custom_call.1} parent=55 // pred_check_branch
          %449 = sbr.rel (%p447) target = $region60
        $region59: #{tpu_custom_call.1} parent=55 // pred_region
          %s450 = sand.u32 %s44, 1
          %s451 = scalar_lea.sflag [#allocation3], %s450
          %s452 = sand.u32 %s44, 1
          %s453 = smul.addr %s452, 256
          %s454 = scalar_lea.vmem [#allocation2], %s453
          %s455 = smul.u32 32, %s34
          %s457 = ssub.s32 4096, 4096
          %458 = vsyncadd %s451, %s457
          %s459 = smul.addr %s455, 128
          %s460 = scalar_lea.hbm %s0, %s459
          %s461 = sshll.u32 %s454, 4
          %s462 = int_to_ptr.vmem [resolvable:$true] %s461
          %467 = dma.hbm_to_vmem [thread:$0]  %s460, 4096, %s462, %s451, 128, 128, 8
        $region60: #{tpu_custom_call.1} parent=55 // pred_fallthru
          _
        // Predicated region
        $region61: #{tpu_custom_call.1} parent=55 // pred_check
          %p468 = pneg %p80
        $region62: #{tpu_custom_call.1} parent=55 // pred_check_branch
          %470 = sbr.rel (%p468) target = $region64
        $region63: #{tpu_custom_call.1} parent=55 // pred_region
          %s471 = sand.u32 %s34, 1
          %s472 = scalar_lea.sflag [#allocation6], %s471
          %s473 = sand.u32 %s70, 1
          %s474 = smul.addr %s473, 256
          %s475 = scalar_lea.vmem [#allocation5], %s474
          %s476 = smul.u32 32, %s34
          %s478 = ssub.s32 4096, 4096
          %479 = vsyncadd %s472, %s478
          %s480 = smul.addr %s476, 128
          %s481 = scalar_lea.hbm %s1, %s480
          %s482 = sshll.u32 %s475, 4
          %s483 = int_to_ptr.vmem [resolvable:$true] %s482
          %488 = dma.hbm_to_vmem [thread:$0]  %s481, 4096, %s483, %s472, 128, 128, 8
        $region64: #{tpu_custom_call.1} parent=55 // pred_fallthru
          _
      $region56: #{tpu_custom_call.1} parent=5 // pred_fallthru
        _
      %p489 = scmp.le.s32.totalorder 1, %s34
      %p490 = scmp.lt.s32.totalorder %s34, 3
      %p491 = pnand %p489, %p490
      %p492 = pneg %p491
      // Predicated region
      $region65: #{tpu_custom_call.1} parent=5 // pred_check
        _
      $region66: #{tpu_custom_call.1} parent=5 // pred_check_branch
        %494 = sbr.rel (%p491) target = $region68
      $region67: #{tpu_custom_call.1} parent=5 // pred_region
        %s495 = ssub.s32 %s34, 1
        %s496 = sand.u32 %s47, 1
        %s497 = scalar_lea.sflag [#allocation3], %s496
        %s498 = sand.u32 %s47, 1
        %s499 = smul.addr %s498, 256
        %s500 = scalar_lea.vmem [#allocation2], %s499
        // Predicated region
        $region69: #{tpu_custom_call.1} parent=67 // pred_check
          %p501 = pneg %p60
        $region70: #{tpu_custom_call.1} parent=67 // pred_check_branch
          %503 = sbr.rel (%p501) target = $region72
        $region71: #{tpu_custom_call.1} parent=67 // pred_region
          %504 = dma.done %s497, 4096
        $region72: #{tpu_custom_call.1} parent=67 // pred_fallthru
          _
        %s505 = sand.u32 %s39, 1
        %s506 = scalar_lea.sflag [#allocation6], %s505
        %s507 = sand.u32 %s73, 1
        %s508 = smul.addr %s507, 256
        %s509 = scalar_lea.vmem [#allocation5], %s508
        // Predicated region
        $region73: #{tpu_custom_call.1} parent=67 // pred_check
          %p510 = pneg %p86
        $region74: #{tpu_custom_call.1} parent=67 // pred_check_branch
          %512 = sbr.rel (%p510) target = $region76
        $region75: #{tpu_custom_call.1} parent=67 // pred_region
          %513 = dma.done %s506, 4096
        $region76: #{tpu_custom_call.1} parent=67 // pred_fallthru
          _
        // Predicated region
        $region77: #{tpu_custom_call.1} parent=67 // pred_check
          %p514 = pneg %p107
        $region78: #{tpu_custom_call.1} parent=67 // pred_check_branch
          %516 = sbr.rel (%p514) target = $region80
        $region79: #{tpu_custom_call.1} parent=67 // pred_region
          %517 = dma.done [#allocation6], 1024
        $region80: #{tpu_custom_call.1} parent=67 // pred_fallthru
          _
        // Predicated region
        $region81: #{tpu_custom_call.1} parent=67 // pred_check
          %p518 = pneg %p149
        $region82: #{tpu_custom_call.1} parent=67 // pred_check_branch
          %520 = sbr.rel (%p518) target = $region84
        $region83: #{tpu_custom_call.1} parent=67 // pred_region
          %521 = dma.done [#allocation9], 1024
        $region84: #{tpu_custom_call.1} parent=67 // pred_fallthru
          _
        // Predicated region
        $region85: #{tpu_custom_call.1} parent=67 // pred_check
          %p522 = pneg %p191
        $region86: #{tpu_custom_call.1} parent=67 // pred_check_branch
          %524 = sbr.rel (%p522) target = $region88
        $region87: #{tpu_custom_call.1} parent=67 // pred_region
          %525 = dma.done [#allocation9], 1024
        $region88: #{tpu_custom_call.1} parent=67 // pred_fallthru
          _
        // Predicated region
        $region89: #{tpu_custom_call.1} parent=67 // pred_check
          %p526 = pneg %p233
        $region90: #{tpu_custom_call.1} parent=67 // pred_check_branch
          %528 = sbr.rel (%p526) target = $region92
        $region91: #{tpu_custom_call.1} parent=67 // pred_region
          %529 = dma.done [#allocation12], 1024
        $region92: #{tpu_custom_call.1} parent=67 // pred_fallthru
          _
        // Predicated region
        $region93: #{tpu_custom_call.1} parent=67 // pred_check
          %p530 = pneg %p275
        $region94: #{tpu_custom_call.1} parent=67 // pred_check_branch
          %532 = sbr.rel (%p530) target = $region96
        $region95: #{tpu_custom_call.1} parent=67 // pred_region
          %533 = dma.done [#allocation12], 1024
        $region96: #{tpu_custom_call.1} parent=67 // pred_fallthru
          _
        %s534 = sand.u32 %s47, 1
        %s535 = scalar_lea.sflag [#allocation3], %s534
        %s536 = sand.u32 %s47, 1
        %s537 = smul.addr %s536, 256
        %s538 = scalar_lea.vmem [#allocation2], %s537
        %p539 = pneg %p60
        %p540 = pneg %p57
        %s541 = sand.u32 %s39, 1
        %s542 = scalar_lea.sflag [#allocation6], %s541
        %s543 = sand.u32 %s73, 1
        %s544 = smul.addr %s543, 256
        %s545 = scalar_lea.vmem [#allocation5], %s544
        %p546 = pneg %p86
        %p547 = pneg %p83
        %p548 = pneg %p107
        %p549 = pneg %p104
        %p550 = pneg %p128
        %p551 = pneg %p125
        %p552 = pneg %p149
        %p553 = pneg %p146
        %p554 = pneg %p170
        %p555 = pneg %p167
        %p556 = pneg %p191
        %p557 = pneg %p188
        %p558 = pneg %p212
        %p559 = pneg %p209
        %p560 = pneg %p233
        %p561 = pneg %p230
        %p562 = pneg %p254
        %p563 = pneg %p251
        %p564 = pneg %p275
        %p565 = pneg %p272
        %p566 = pneg %p296
        %p567 = pneg %p293
        %p568 = pneg %p322
        %p569 = pneg %p319
        %s570 = sand.u32 %s309, 1
        %s571 = scalar_lea.sflag [#allocation4], %s570
        %s572 = sand.u32 %s309, 1
        %s573 = smul.addr %s572, 256
        %s574 = scalar_lea.vmem [#allocation14], %s573
        %p575 = pneg %p348
        %p576 = pneg %p345
        %s577 = sand.u32 %s335, 1
        %s578 = scalar_lea.sflag [#allocation16], %s577
        %s579 = sand.u32 %s335, 1
        %s580 = smul.addr %s579, 256
        %s581 = scalar_lea.vmem [#allocation15], %s580
        %s582 = smul.u32 32, %s39
        %s583 = smul.u32 32, %s39
        %s584 = smul.u32 32, %s39
        %s585 = smul.u32 32, %s39
        %v587 = vld [vmem:[%s500] sm:$0xff]
        %v588 = vld [vmem:[%s500 + $0x8] sm:$0xff]
        %v589 = vld [vmem:[%s500 + $0x10] sm:$0xff]
        %v590 = vld [vmem:[%s500 + $0x18] sm:$0xff]
        %v591 = vld [vmem:[%s500 + $0x20] sm:$0xff]
        %v592 = vld [vmem:[%s500 + $0x28] sm:$0xff]
        %v593 = vld [vmem:[%s500 + $0x30] sm:$0xff]
        %v594 = vld [vmem:[%s500 + $0x38] sm:$0xff]
        %v595 = vld [vmem:[%s500 + $0x40] sm:$0xff]
        %v596 = vld [vmem:[%s500 + $0x48] sm:$0xff]
        %v597 = vld [vmem:[%s500 + $0x50] sm:$0xff]
        %v598 = vld [vmem:[%s500 + $0x58] sm:$0xff]
        %v599 = vld [vmem:[%s500 + $0x60] sm:$0xff]
        %v600 = vld [vmem:[%s500 + $0x68] sm:$0xff]
        %v601 = vld [vmem:[%s500 + $0x70] sm:$0xff]
        %v602 = vld [vmem:[%s500 + $0x78] sm:$0xff]
        %v603 = vld [vmem:[%s500 + $0x80] sm:$0xff]
        %v604 = vld [vmem:[%s500 + $0x88] sm:$0xff]
        %v605 = vld [vmem:[%s500 + $0x90] sm:$0xff]
        %v606 = vld [vmem:[%s500 + $0x98] sm:$0xff]
        %v607 = vld [vmem:[%s500 + $0xa0] sm:$0xff]
        %v608 = vld [vmem:[%s500 + $0xa8] sm:$0xff]
        %v609 = vld [vmem:[%s500 + $0xb0] sm:$0xff]
        %v610 = vld [vmem:[%s500 + $0xb8] sm:$0xff]
        %v611 = vld [vmem:[%s500 + $0xc0] sm:$0xff]
        %v612 = vld [vmem:[%s500 + $0xc8] sm:$0xff]
        %v613 = vld [vmem:[%s500 + $0xd0] sm:$0xff]
        %v614 = vld [vmem:[%s500 + $0xd8] sm:$0xff]
        %v615 = vld [vmem:[%s500 + $0xe0] sm:$0xff]
        %v616 = vld [vmem:[%s500 + $0xe8] sm:$0xff]
        %v617 = vld [vmem:[%s500 + $0xf0] sm:$0xff]
        %v618 = vld [vmem:[%s500 + $0xf8] sm:$0xff]
        %v619 = vpack.c.bf16 %v588, %v587
        %v620 = vpack.c.bf16 %v590, %v589
        %v621 = vpack.c.bf16 %v592, %v591
        %v622 = vpack.c.bf16 %v594, %v593
        %v623 = vpack.c.bf16 %v596, %v595
        %v624 = vpack.c.bf16 %v598, %v597
        %v625 = vpack.c.bf16 %v600, %v599
        %v626 = vpack.c.bf16 %v602, %v601
        %v627 = vpack.c.bf16 %v604, %v603
        %v628 = vpack.c.bf16 %v606, %v605
        %v629 = vpack.c.bf16 %v608, %v607
        %v630 = vpack.c.bf16 %v610, %v609
        %v631 = vpack.c.bf16 %v612, %v611
        %v632 = vpack.c.bf16 %v614, %v613
        %v633 = vpack.c.bf16 %v616, %v615
        %v634 = vpack.c.bf16 %v618, %v617
        %v635 = vld [vmem:[#allocation7] sm:$0xf]
        %v636 = vld [vmem:[#allocation7 + $0x4] sm:$0xf]
        %v637 = vld [vmem:[#allocation7 + $0x8] sm:$0xf]
        %v638 = vld [vmem:[#allocation7 + $0xc] sm:$0xf]
        %v639 = vld [vmem:[#allocation7 + $0x10] sm:$0xf]
        %v640 = vld [vmem:[#allocation7 + $0x14] sm:$0xf]
        %v641 = vld [vmem:[#allocation7 + $0x18] sm:$0xf]
        %v642 = vld [vmem:[#allocation7 + $0x1c] sm:$0xf]
        %v643 = vld [vmem:[#allocation7 + $0x20] sm:$0xf]
        %v644 = vld [vmem:[#allocation7 + $0x24] sm:$0xf]
        %v645 = vld [vmem:[#allocation7 + $0x28] sm:$0xf]
        %v646 = vld [vmem:[#allocation7 + $0x2c] sm:$0xf]
        %v647 = vld [vmem:[#allocation7 + $0x30] sm:$0xf]
        %v648 = vld [vmem:[#allocation7 + $0x34] sm:$0xf]
        %v649 = vld [vmem:[#allocation7 + $0x38] sm:$0xf]
        %v650 = vld [vmem:[#allocation7 + $0x3c] sm:$0xf]
        %v651 = vld [vmem:[%s3] sm:$0x1]
        %v653 = vlaneseq
        %v654 = vshrl.u32 %v653, 7
        %v655 = vsub.s32 0, %v654
        %v656 = vrot.slane %v651, %v655
        %v674 = vunpack.c.l.b16 %v635
        %v675 = vunpack.c.l.b16 %v636
        %v676 = vunpack.c.l.b16 %v637
        %v677 = vunpack.c.l.b16 %v638
        %v678 = vunpack.c.l.b16 %v639
        %v679 = vunpack.c.l.b16 %v640
        %v680 = vunpack.c.l.b16 %v641
        %v681 = vunpack.c.l.b16 %v642
        %v682 = vunpack.c.l.b16 %v643
        %v683 = vunpack.c.l.b16 %v644
        %v684 = vunpack.c.l.b16 %v645
        %v685 = vunpack.c.l.b16 %v646
        %v686 = vunpack.c.l.b16 %v647
        %v687 = vunpack.c.l.b16 %v648
        %v688 = vunpack.c.l.b16 %v649
        %v689 = vunpack.c.l.b16 %v650
        %v690 = vpack.c.b16 %v675, %v674
        %v691 = vpack.c.b16 %v677, %v676
        %v692 = vpack.c.b16 %v679, %v678
        %v693 = vpack.c.b16 %v681, %v680
        %v694 = vpack.c.b16 %v683, %v682
        %v695 = vpack.c.b16 %v685, %v684
        %v696 = vpack.c.b16 %v687, %v686
        %v697 = vpack.c.b16 %v689, %v688
        %706 = vmatprep.subr.bf16.mxu0 0
        %707 = vmatpush1.bf16.msra.mxu0 %v690
        %708 = vmatprep.subr.bf16.mxu0 0
        %709 = vmatpush1.bf16.msra.mxu0 %v691
        %710 = vmatprep.subr.bf16.mxu0 0
        %711 = vmatpush1.bf16.msra.mxu0 %v692
        %712 = vmatprep.subr.bf16.mxu0 0
        %713 = vmatpush1.bf16.msra.mxu0 %v693
        %714 = vmatprep.subr.bf16.mxu0 0
        %715 = vmatpush1.bf16.msra.mxu0 %v694
        %716 = vmatprep.subr.bf16.mxu0 0
        %717 = vmatpush1.bf16.msra.mxu0 %v695
        %718 = vmatprep.subr.bf16.mxu0 0
        %719 = vmatpush1.bf16.msra.mxu0 %v696
        %720 = vmatprep.subr.bf16.mxu0 0
        %721 = vmatpush1.bf16.msra.mxu0 %v697
        %722 = vmatprep.subr.bf16.mxu0 0
        %723 = vmatpush1.bf16.msra.mxu0 0
        %724 = vmatprep.subr.bf16.mxu0 0
        %725 = vmatpush1.bf16.msra.mxu0 0
        %726 = vmatprep.subr.bf16.mxu0 0
        %727 = vmatpush1.bf16.msra.mxu0 0
        %728 = vmatprep.subr.bf16.mxu0 0
        %729 = vmatpush1.bf16.msra.mxu0 0
        %730 = vmatprep.subr.bf16.mxu0 0
        %731 = vmatpush1.bf16.msra.mxu0 0
        %732 = vmatprep.subr.bf16.mxu0 0
        %733 = vmatpush1.bf16.msra.mxu0 0
        %734 = vmatprep.subr.bf16.mxu0 0
        %735 = vmatpush1.bf16.msra.mxu0 0
        %736 = vmatprep.subr.bf16.mxu0 0
        %737 = vmatpush1.bf16.msra.mxu0 0
        %738 = vmatprep.mubr.bf16.mxu0 0
        %739 = vmatmul.mubr.bf16.gmra.mrb[0].mxu0 %v619
        %v740 = vpop.f32.mrb[0].mxu0
        %v741 = vadd.f32 %v656, %v740
        %v742 = vpop.f32.mrb[0].mxu0
        %v743 = vpop.f32.mrb[0].mxu0
        %v744 = vadd.f32 %v656, %v743
        %v745 = vpop.f32.mrb[0].mxu0
        %746 = vmatprep.mubr.bf16.mxu0 0
        %747 = vmatmul.mubr.bf16.gmra.mrb[0].mxu0 %v620
        %v748 = vpop.f32.mrb[0].mxu0
        %v749 = vadd.f32 %v656, %v748
        %v750 = vpop.f32.mrb[0].mxu0
        %v751 = vpop.f32.mrb[0].mxu0
        %v752 = vadd.f32 %v656, %v751
        %v753 = vpop.f32.mrb[0].mxu0
        %754 = vmatprep.mubr.bf16.mxu0 0
        %755 = vmatmul.mubr.bf16.gmra.mrb[0].mxu0 %v621
        %v756 = vpop.f32.mrb[0].mxu0
        %v757 = vadd.f32 %v656, %v756
        %v758 = vpop.f32.mrb[0].mxu0
        %v759 = vpop.f32.mrb[0].mxu0
        %v760 = vadd.f32 %v656, %v759
        %v761 = vpop.f32.mrb[0].mxu0
        %762 = vmatprep.mubr.bf16.mxu0 0
        %763 = vmatmul.mubr.bf16.gmra.mrb[0].mxu0 %v622
        %v764 = vpop.f32.mrb[0].mxu0
        %v765 = vadd.f32 %v656, %v764
        %v766 = vpop.f32.mrb[0].mxu0
        %v767 = vpop.f32.mrb[0].mxu0
        %v768 = vadd.f32 %v656, %v767
        %v769 = vpop.f32.mrb[0].mxu0
        %770 = vmatprep.mubr.bf16.mxu0 0
        %771 = vmatmul.mubr.bf16.gmra.mrb[0].mxu0 %v623
        %v772 = vpop.f32.mrb[0].mxu0
        %v773 = vadd.f32 %v656, %v772
        %v774 = vpop.f32.mrb[0].mxu0
        %v775 = vpop.f32.mrb[0].mxu0
        %v776 = vadd.f32 %v656, %v775
        %v777 = vpop.f32.mrb[0].mxu0
        %778 = vmatprep.mubr.bf16.mxu0 0
        %779 = vmatmul.mubr.bf16.gmra.mrb[0].mxu0 %v624
        %v780 = vpop.f32.mrb[0].mxu0
        %v781 = vadd.f32 %v656, %v780
        %v782 = vpop.f32.mrb[0].mxu0
        %v783 = vpop.f32.mrb[0].mxu0
        %v784 = vadd.f32 %v656, %v783
        %v785 = vpop.f32.mrb[0].mxu0
        %786 = vmatprep.mubr.bf16.mxu0 0
        %787 = vmatmul.mubr.bf16.gmra.mrb[0].mxu0 %v625
        %v788 = vpop.f32.mrb[0].mxu0
        %v789 = vadd.f32 %v656, %v788
        %v790 = vpop.f32.mrb[0].mxu0
        %v791 = vpop.f32.mrb[0].mxu0
        %v792 = vadd.f32 %v656, %v791
        %v793 = vpop.f32.mrb[0].mxu0
        %794 = vmatprep.mubr.bf16.mxu0 0
        %795 = vmatmul.mubr.bf16.gmra.mrb[0].mxu0 %v626
        %v796 = vpop.f32.mrb[0].mxu0
        %v797 = vadd.f32 %v656, %v796
        %v798 = vpop.f32.mrb[0].mxu0
        %v799 = vpop.f32.mrb[0].mxu0
        %v800 = vadd.f32 %v656, %v799
        %v801 = vpop.f32.mrb[0].mxu0
        %802 = vmatprep.mubr.bf16.mxu0 0
        %803 = vmatmul.mubr.bf16.gmra.mrb[0].mxu0 %v627
        %v804 = vpop.f32.mrb[0].mxu0
        %v805 = vadd.f32 %v656, %v804
        %v806 = vpop.f32.mrb[0].mxu0
        %v807 = vpop.f32.mrb[0].mxu0
        %v808 = vadd.f32 %v656, %v807
        %v809 = vpop.f32.mrb[0].mxu0
        %810 = vmatprep.mubr.bf16.mxu0 0
        %811 = vmatmul.mubr.bf16.gmra.mrb[0].mxu0 %v628
        %v812 = vpop.f32.mrb[0].mxu0
        %v813 = vadd.f32 %v656, %v812
        %v814 = vpop.f32.mrb[0].mxu0
        %v815 = vpop.f32.mrb[0].mxu0
        %v816 = vadd.f32 %v656, %v815
        %v817 = vpop.f32.mrb[0].mxu0
        %818 = vmatprep.mubr.bf16.mxu0 0
        %819 = vmatmul.mubr.bf16.gmra.mrb[0].mxu0 %v629
        %v820 = vpop.f32.mrb[0].mxu0
        %v821 = vadd.f32 %v656, %v820
        %v822 = vpop.f32.mrb[0].mxu0
        %v823 = vpop.f32.mrb[0].mxu0
        %v824 = vadd.f32 %v656, %v823
        %v825 = vpop.f32.mrb[0].mxu0
        %826 = vmatprep.mubr.bf16.mxu0 0
        %827 = vmatmul.mubr.bf16.gmra.mrb[0].mxu0 %v630
        %v828 = vpop.f32.mrb[0].mxu0
        %v829 = vadd.f32 %v656, %v828
        %v830 = vpop.f32.mrb[0].mxu0
        %v831 = vpop.f32.mrb[0].mxu0
        %v832 = vadd.f32 %v656, %v831
        %v833 = vpop.f32.mrb[0].mxu0
        %834 = vmatprep.mubr.bf16.mxu0 0
        %835 = vmatmul.mubr.bf16.gmra.mrb[0].mxu0 %v631
        %v836 = vpop.f32.mrb[0].mxu0
        %v837 = vadd.f32 %v656, %v836
        %v838 = vpop.f32.mrb[0].mxu0
        %v839 = vpop.f32.mrb[0].mxu0
        %v840 = vadd.f32 %v656, %v839
        %v841 = vpop.f32.mrb[0].mxu0
        %842 = vmatprep.mubr.bf16.mxu0 0
        %843 = vmatmul.mubr.bf16.gmra.mrb[0].mxu0 %v632
        %v844 = vpop.f32.mrb[0].mxu0
        %v845 = vadd.f32 %v656, %v844
        %v846 = vpop.f32.mrb[0].mxu0
        %v847 = vpop.f32.mrb[0].mxu0
        %v848 = vadd.f32 %v656, %v847
        %v849 = vpop.f32.mrb[0].mxu0
        %850 = vmatprep.mubr.bf16.mxu0 0
        %851 = vmatmul.mubr.bf16.gmra.mrb[0].mxu0 %v633
        %v852 = vpop.f32.mrb[0].mxu0
        %v853 = vadd.f32 %v656, %v852
        %v854 = vpop.f32.mrb[0].mxu0
        %v855 = vpop.f32.mrb[0].mxu0
        %v856 = vadd.f32 %v656, %v855
        %v857 = vpop.f32.mrb[0].mxu0
        %858 = vmatprep.mubr.bf16.mxu0 0
        %859 = vmatmul.mubr.bf16.gmra.mrb[0].mxu0 %v634
        %v860 = vpop.f32.mrb[0].mxu0
        %v861 = vadd.f32 %v656, %v860
        %v862 = vpop.f32.mrb[0].mxu0
        %v863 = vpop.f32.mrb[0].mxu0
        %v864 = vadd.f32 %v656, %v863
        %v865 = vpop.f32.mrb[0].mxu0
        %866 = vdwg.mxu0
        %v867 = vmax.f32 %v741, 0.0
        %v868 = vmax.f32 %v744, 0.0
        %v869 = vmax.f32 %v749, 0.0
        %v870 = vmax.f32 %v752, 0.0
        %v871 = vmax.f32 %v757, 0.0
        %v872 = vmax.f32 %v760, 0.0
        %v873 = vmax.f32 %v765, 0.0
        %v874 = vmax.f32 %v768, 0.0
        %v875 = vmax.f32 %v773, 0.0
        %v876 = vmax.f32 %v776, 0.0
        %v877 = vmax.f32 %v781, 0.0
        %v878 = vmax.f32 %v784, 0.0
        %v879 = vmax.f32 %v789, 0.0
        %v880 = vmax.f32 %v792, 0.0
        %v881 = vmax.f32 %v797, 0.0
        %v882 = vmax.f32 %v800, 0.0
        %v883 = vmax.f32 %v805, 0.0
        %v884 = vmax.f32 %v808, 0.0
        %v885 = vmax.f32 %v813, 0.0
        %v886 = vmax.f32 %v816, 0.0
        %v887 = vmax.f32 %v821, 0.0
        %v888 = vmax.f32 %v824, 0.0
        %v889 = vmax.f32 %v829, 0.0
        %v890 = vmax.f32 %v832, 0.0
        %v891 = vmax.f32 %v837, 0.0
        %v892 = vmax.f32 %v840, 0.0
        %v893 = vmax.f32 %v845, 0.0
        %v894 = vmax.f32 %v848, 0.0
        %v895 = vmax.f32 %v853, 0.0
        %v896 = vmax.f32 %v856, 0.0
        %v897 = vmax.f32 %v861, 0.0
        %v898 = vmax.f32 %v864, 0.0
        %v899 = vpack.c.bf16 %v868, %v867
        %v900 = vpack.c.bf16 %v870, %v869
        %v901 = vpack.c.bf16 %v872, %v871
        %v902 = vpack.c.bf16 %v874, %v873
        %v903 = vpack.c.bf16 %v876, %v875
        %v904 = vpack.c.bf16 %v878, %v877
        %v905 = vpack.c.bf16 %v880, %v879
        %v906 = vpack.c.bf16 %v882, %v881
        %v907 = vpack.c.bf16 %v884, %v883
        %v908 = vpack.c.bf16 %v886, %v885
        %v909 = vpack.c.bf16 %v888, %v887
        %v910 = vpack.c.bf16 %v890, %v889
        %v911 = vpack.c.bf16 %v892, %v891
        %v912 = vpack.c.bf16 %v894, %v893
        %v913 = vpack.c.bf16 %v896, %v895
        %v914 = vpack.c.bf16 %v898, %v897
        %v915 = vld [vmem:[#allocation8] sm:$0xf]
        %v916 = vld [vmem:[#allocation8 + $0x4] sm:$0xf]
        %v917 = vld [vmem:[#allocation8 + $0x8] sm:$0xf]
        %v918 = vld [vmem:[#allocation8 + $0xc] sm:$0xf]
        %v919 = vld [vmem:[#allocation8 + $0x10] sm:$0xf]
        %v920 = vld [vmem:[#allocation8 + $0x14] sm:$0xf]
        %v921 = vld [vmem:[#allocation8 + $0x18] sm:$0xf]
        %v922 = vld [vmem:[#allocation8 + $0x1c] sm:$0xf]
        %v923 = vld [vmem:[#allocation8 + $0x20] sm:$0xf]
        %v924 = vld [vmem:[#allocation8 + $0x24] sm:$0xf]
        %v925 = vld [vmem:[#allocation8 + $0x28] sm:$0xf]
        %v926 = vld [vmem:[#allocation8 + $0x2c] sm:$0xf]
        %v927 = vld [vmem:[#allocation8 + $0x30] sm:$0xf]
        %v928 = vld [vmem:[#allocation8 + $0x34] sm:$0xf]
        %v929 = vld [vmem:[#allocation8 + $0x38] sm:$0xf]
        %v930 = vld [vmem:[#allocation8 + $0x3c] sm:$0xf]
        %v931 = vld [vmem:[%s5] sm:$0x1]
        %v933 = vlaneseq
        %v934 = vshrl.u32 %v933, 7
        %v935 = vsub.s32 0, %v934
        %v936 = vrot.slane %v931, %v935
        %v954 = vunpack.c.l.b16 %v915
        %v955 = vunpack.c.l.b16 %v916
        %v956 = vunpack.c.l.b16 %v917
        %v957 = vunpack.c.l.b16 %v918
        %v958 = vunpack.c.l.b16 %v919
        %v959 = vunpack.c.l.b16 %v920
        %v960 = vunpack.c.l.b16 %v921
        %v961 = vunpack.c.l.b16 %v922
        %v962 = vunpack.c.l.b16 %v923
        %v963 = vunpack.c.l.b16 %v924
        %v964 = vunpack.c.l.b16 %v925
        %v965 = vunpack.c.l.b16 %v926
        %v966 = vunpack.c.l.b16 %v927
        %v967 = vunpack.c.l.b16 %v928
        %v968 = vunpack.c.l.b16 %v929
        %v969 = vunpack.c.l.b16 %v930
        %v970 = vpack.c.b16 %v955, %v954
        %v971 = vpack.c.b16 %v957, %v956
        %v972 = vpack.c.b16 %v959, %v958
        %v973 = vpack.c.b16 %v961, %v960
        %v974 = vpack.c.b16 %v963, %v962
        %v975 = vpack.c.b16 %v965, %v964
        %v976 = vpack.c.b16 %v967, %v966
        %v977 = vpack.c.b16 %v969, %v968
        %986 = vmatprep.subr.bf16.mxu0 0
        %987 = vmatpush1.bf16.msra.mxu0 %v970
        %988 = vmatprep.subr.bf16.mxu0 0
        %989 = vmatpush1.bf16.msra.mxu0 %v971
        %990 = vmatprep.subr.bf16.mxu0 0
        %991 = vmatpush1.bf16.msra.mxu0 %v972
        %992 = vmatprep.subr.bf16.mxu0 0
        %993 = vmatpush1.bf16.msra.mxu0 %v973
        %994 = vmatprep.subr.bf16.mxu0 0
        %995 = vmatpush1.bf16.msra.mxu0 %v974
        %996 = vmatprep.subr.bf16.mxu0 0
        %997 = vmatpush1.bf16.msra.mxu0 %v975
        %998 = vmatprep.subr.bf16.mxu0 0
        %999 = vmatpush1.bf16.msra.mxu0 %v976
        %1000 = vmatprep.subr.bf16.mxu0 0
        %1001 = vmatpush1.bf16.msra.mxu0 %v977
        %1002 = vmatprep.subr.bf16.mxu0 0
        %1003 = vmatpush1.bf16.msra.mxu0 0
        %1004 = vmatprep.subr.bf16.mxu0 0
        %1005 = vmatpush1.bf16.msra.mxu0 0
        %1006 = vmatprep.subr.bf16.mxu0 0
        %1007 = vmatpush1.bf16.msra.mxu0 0
        %1008 = vmatprep.subr.bf16.mxu0 0
        %1009 = vmatpush1.bf16.msra.mxu0 0
        %1010 = vmatprep.subr.bf16.mxu0 0
        %1011 = vmatpush1.bf16.msra.mxu0 0
        %1012 = vmatprep.subr.bf16.mxu0 0
        %1013 = vmatpush1.bf16.msra.mxu0 0
        %1014 = vmatprep.subr.bf16.mxu0 0
        %1015 = vmatpush1.bf16.msra.mxu0 0
        %1016 = vmatprep.subr.bf16.mxu0 0
        %1017 = vmatpush1.bf16.msra.mxu0 0
        %1018 = vmatprep.mubr.bf16.mxu0 0
        %1019 = vmatmul.mubr.bf16.gmra.mrb[0].mxu0 %v899
        %v1020 = vpop.f32.mrb[0].mxu0
        %v1021 = vadd.f32 %v936, %v1020
        %v1022 = vpop.f32.mrb[0].mxu0
        %v1023 = vpop.f32.mrb[0].mxu0
        %v1024 = vadd.f32 %v936, %v1023
        %v1025 = vpop.f32.mrb[0].mxu0
        %1026 = vmatprep.mubr.bf16.mxu0 0
        %1027 = vmatmul.mubr.bf16.gmra.mrb[0].mxu0 %v900
        %v1028 = vpop.f32.mrb[0].mxu0
        %v1029 = vadd.f32 %v936, %v1028
        %v1030 = vpop.f32.mrb[0].mxu0
        %v1031 = vpop.f32.mrb[0].mxu0
        %v1032 = vadd.f32 %v936, %v1031
        %v1033 = vpop.f32.mrb[0].mxu0
        %1034 = vmatprep.mubr.bf16.mxu0 0
        %1035 = vmatmul.mubr.bf16.gmra.mrb[0].mxu0 %v901
        %v1036 = vpop.f32.mrb[0].mxu0
        %v1037 = vadd.f32 %v936, %v1036
        %v1038 = vpop.f32.mrb[0].mxu0
        %v1039 = vpop.f32.mrb[0].mxu0
        %v1040 = vadd.f32 %v936, %v1039
        %v1041 = vpop.f32.mrb[0].mxu0
        %1042 = vmatprep.mubr.bf16.mxu0 0
        %1043 = vmatmul.mubr.bf16.gmra.mrb[0].mxu0 %v902
        %v1044 = vpop.f32.mrb[0].mxu0
        %v1045 = vadd.f32 %v936, %v1044
        %v1046 = vpop.f32.mrb[0].mxu0
        %v1047 = vpop.f32.mrb[0].mxu0
        %v1048 = vadd.f32 %v936, %v1047
        %v1049 = vpop.f32.mrb[0].mxu0
        %1050 = vmatprep.mubr.bf16.mxu0 0
        %1051 = vmatmul.mubr.bf16.gmra.mrb[0].mxu0 %v903
        %v1052 = vpop.f32.mrb[0].mxu0
        %v1053 = vadd.f32 %v936, %v1052
        %v1054 = vpop.f32.mrb[0].mxu0
        %v1055 = vpop.f32.mrb[0].mxu0
        %v1056 = vadd.f32 %v936, %v1055
        %v1057 = vpop.f32.mrb[0].mxu0
        %1058 = vmatprep.mubr.bf16.mxu0 0
        %1059 = vmatmul.mubr.bf16.gmra.mrb[0].mxu0 %v904
        %v1060 = vpop.f32.mrb[0].mxu0
        %v1061 = vadd.f32 %v936, %v1060
        %v1062 = vpop.f32.mrb[0].mxu0
        %v1063 = vpop.f32.mrb[0].mxu0
        %v1064 = vadd.f32 %v936, %v1063
        %v1065 = vpop.f32.mrb[0].mxu0
        %1066 = vmatprep.mubr.bf16.mxu0 0
        %1067 = vmatmul.mubr.bf16.gmra.mrb[0].mxu0 %v905
        %v1068 = vpop.f32.mrb[0].mxu0
        %v1069 = vadd.f32 %v936, %v1068
        %v1070 = vpop.f32.mrb[0].mxu0
        %v1071 = vpop.f32.mrb[0].mxu0
        %v1072 = vadd.f32 %v936, %v1071
        %v1073 = vpop.f32.mrb[0].mxu0
        %1074 = vmatprep.mubr.bf16.mxu0 0
        %1075 = vmatmul.mubr.bf16.gmra.mrb[0].mxu0 %v906
        %v1076 = vpop.f32.mrb[0].mxu0
        %v1077 = vadd.f32 %v936, %v1076
        %v1078 = vpop.f32.mrb[0].mxu0
        %v1079 = vpop.f32.mrb[0].mxu0
        %v1080 = vadd.f32 %v936, %v1079
        %v1081 = vpop.f32.mrb[0].mxu0
        %1082 = vmatprep.mubr.bf16.mxu0 0
        %1083 = vmatmul.mubr.bf16.gmra.mrb[0].mxu0 %v907
        %v1084 = vpop.f32.mrb[0].mxu0
        %v1085 = vadd.f32 %v936, %v1084
        %v1086 = vpop.f32.mrb[0].mxu0
        %v1087 = vpop.f32.mrb[0].mxu0
        %v1088 = vadd.f32 %v936, %v1087
        %v1089 = vpop.f32.mrb[0].mxu0
        %1090 = vmatprep.mubr.bf16.mxu0 0
        %1091 = vmatmul.mubr.bf16.gmra.mrb[0].mxu0 %v908
        %v1092 = vpop.f32.mrb[0].mxu0
        %v1093 = vadd.f32 %v936, %v1092
        %v1094 = vpop.f32.mrb[0].mxu0
        %v1095 = vpop.f32.mrb[0].mxu0
        %v1096 = vadd.f32 %v936, %v1095
        %v1097 = vpop.f32.mrb[0].mxu0
        %1098 = vmatprep.mubr.bf16.mxu0 0
        %1099 = vmatmul.mubr.bf16.gmra.mrb[0].mxu0 %v909
        %v1100 = vpop.f32.mrb[0].mxu0
        %v1101 = vadd.f32 %v936, %v1100
        %v1102 = vpop.f32.mrb[0].mxu0
        %v1103 = vpop.f32.mrb[0].mxu0
        %v1104 = vadd.f32 %v936, %v1103
        %v1105 = vpop.f32.mrb[0].mxu0
        %1106 = vmatprep.mubr.bf16.mxu0 0
        %1107 = vmatmul.mubr.bf16.gmra.mrb[0].mxu0 %v910
        %v1108 = vpop.f32.mrb[0].mxu0
        %v1109 = vadd.f32 %v936, %v1108
        %v1110 = vpop.f32.mrb[0].mxu0
        %v1111 = vpop.f32.mrb[0].mxu0
        %v1112 = vadd.f32 %v936, %v1111
        %v1113 = vpop.f32.mrb[0].mxu0
        %1114 = vmatprep.mubr.bf16.mxu0 0
        %1115 = vmatmul.mubr.bf16.gmra.mrb[0].mxu0 %v911
        %v1116 = vpop.f32.mrb[0].mxu0
        %v1117 = vadd.f32 %v936, %v1116
        %v1118 = vpop.f32.mrb[0].mxu0
        %v1119 = vpop.f32.mrb[0].mxu0
        %v1120 = vadd.f32 %v936, %v1119
        %v1121 = vpop.f32.mrb[0].mxu0
        %1122 = vmatprep.mubr.bf16.mxu0 0
        %1123 = vmatmul.mubr.bf16.gmra.mrb[0].mxu0 %v912
        %v1124 = vpop.f32.mrb[0].mxu0
        %v1125 = vadd.f32 %v936, %v1124
        %v1126 = vpop.f32.mrb[0].mxu0
        %v1127 = vpop.f32.mrb[0].mxu0
        %v1128 = vadd.f32 %v936, %v1127
        %v1129 = vpop.f32.mrb[0].mxu0
        %1130 = vmatprep.mubr.bf16.mxu0 0
        %1131 = vmatmul.mubr.bf16.gmra.mrb[0].mxu0 %v913
        %v1132 = vpop.f32.mrb[0].mxu0
        %v1133 = vadd.f32 %v936, %v1132
        %v1134 = vpop.f32.mrb[0].mxu0
        %v1135 = vpop.f32.mrb[0].mxu0
        %v1136 = vadd.f32 %v936, %v1135
        %v1137 = vpop.f32.mrb[0].mxu0
        %1138 = vmatprep.mubr.bf16.mxu0 0
        %1139 = vmatmul.mubr.bf16.gmra.mrb[0].mxu0 %v914
        %v1140 = vpop.f32.mrb[0].mxu0
        %v1141 = vadd.f32 %v936, %v1140
        %v1142 = vpop.f32.mrb[0].mxu0
        %v1143 = vpop.f32.mrb[0].mxu0
        %v1144 = vadd.f32 %v936, %v1143
        %v1145 = vpop.f32.mrb[0].mxu0
        %1146 = vdwg.mxu0
        %v1147 = vmax.f32 %v1021, 0.0
        %v1148 = vmax.f32 %v1024, 0.0
        %v1149 = vmax.f32 %v1029, 0.0
        %v1150 = vmax.f32 %v1032, 0.0
        %v1151 = vmax.f32 %v1037, 0.0
        %v1152 = vmax.f32 %v1040, 0.0
        %v1153 = vmax.f32 %v1045, 0.0
        %v1154 = vmax.f32 %v1048, 0.0
        %v1155 = vmax.f32 %v1053, 0.0
        %v1156 = vmax.f32 %v1056, 0.0
        %v1157 = vmax.f32 %v1061, 0.0
        %v1158 = vmax.f32 %v1064, 0.0
        %v1159 = vmax.f32 %v1069, 0.0
        %v1160 = vmax.f32 %v1072, 0.0
        %v1161 = vmax.f32 %v1077, 0.0
        %v1162 = vmax.f32 %v1080, 0.0
        %v1163 = vmax.f32 %v1085, 0.0
        %v1164 = vmax.f32 %v1088, 0.0
        %v1165 = vmax.f32 %v1093, 0.0
        %v1166 = vmax.f32 %v1096, 0.0
        %v1167 = vmax.f32 %v1101, 0.0
        %v1168 = vmax.f32 %v1104, 0.0
        %v1169 = vmax.f32 %v1109, 0.0
        %v1170 = vmax.f32 %v1112, 0.0
        %v1171 = vmax.f32 %v1117, 0.0
        %v1172 = vmax.f32 %v1120, 0.0
        %v1173 = vmax.f32 %v1125, 0.0
        %v1174 = vmax.f32 %v1128, 0.0
        %v1175 = vmax.f32 %v1133, 0.0
        %v1176 = vmax.f32 %v1136, 0.0
        %v1177 = vmax.f32 %v1141, 0.0
        %v1178 = vmax.f32 %v1144, 0.0
        %1179 = vst [vmem:[%s581] sm:$0xff] %v1147
        %1180 = vst [vmem:[%s581 + $0x8] sm:$0xff] %v1148
        %1181 = vst [vmem:[%s581 + $0x10] sm:$0xff] %v1149
        %1182 = vst [vmem:[%s581 + $0x18] sm:$0xff] %v1150
        %1183 = vst [vmem:[%s581 + $0x20] sm:$0xff] %v1151
        %1184 = vst [vmem:[%s581 + $0x28] sm:$0xff] %v1152
        %1185 = vst [vmem:[%s581 + $0x30] sm:$0xff] %v1153
        %1186 = vst [vmem:[%s581 + $0x38] sm:$0xff] %v1154
        %1187 = vst [vmem:[%s581 + $0x40] sm:$0xff] %v1155
        %1188 = vst [vmem:[%s581 + $0x48] sm:$0xff] %v1156
        %1189 = vst [vmem:[%s581 + $0x50] sm:$0xff] %v1157
        %1190 = vst [vmem:[%s581 + $0x58] sm:$0xff] %v1158
        %1191 = vst [vmem:[%s581 + $0x60] sm:$0xff] %v1159
        %1192 = vst [vmem:[%s581 + $0x68] sm:$0xff] %v1160
        %1193 = vst [vmem:[%s581 + $0x70] sm:$0xff] %v1161
        %1194 = vst [vmem:[%s581 + $0x78] sm:$0xff] %v1162
        %1195 = vst [vmem:[%s581 + $0x80] sm:$0xff] %v1163
        %1196 = vst [vmem:[%s581 + $0x88] sm:$0xff] %v1164
        %1197 = vst [vmem:[%s581 + $0x90] sm:$0xff] %v1165
        %1198 = vst [vmem:[%s581 + $0x98] sm:$0xff] %v1166
        %1199 = vst [vmem:[%s581 + $0xa0] sm:$0xff] %v1167
        %1200 = vst [vmem:[%s581 + $0xa8] sm:$0xff] %v1168
        %1201 = vst [vmem:[%s581 + $0xb0] sm:$0xff] %v1169
        %1202 = vst [vmem:[%s581 + $0xb8] sm:$0xff] %v1170
        %1203 = vst [vmem:[%s581 + $0xc0] sm:$0xff] %v1171
        %1204 = vst [vmem:[%s581 + $0xc8] sm:$0xff] %v1172
        %1205 = vst [vmem:[%s581 + $0xd0] sm:$0xff] %v1173
        %1206 = vst [vmem:[%s581 + $0xd8] sm:$0xff] %v1174
        %1207 = vst [vmem:[%s581 + $0xe0] sm:$0xff] %v1175
        %1208 = vst [vmem:[%s581 + $0xe8] sm:$0xff] %v1176
        %1209 = vst [vmem:[%s581 + $0xf0] sm:$0xff] %v1177
        %1210 = vst [vmem:[%s581 + $0xf8] sm:$0xff] %v1178
        %v1211 = vlaneseq
        %v1212 = vand.u32 %v1211, 127
        %vm1213 = vcmp.lt.s32.totalorder %v1212, 64
        %v1214 = vmul.f32 %v1147, 0.5
        %v1215 = vmul.f32 %v1148, 0.5
        %v1216 = vmul.f32 %v1149, 0.5
        %v1217 = vmul.f32 %v1150, 0.5
        %v1218 = vmul.f32 %v1151, 0.5
        %v1219 = vmul.f32 %v1152, 0.5
        %v1220 = vmul.f32 %v1153, 0.5
        %v1221 = vmul.f32 %v1154, 0.5
        %v1222 = vmul.f32 %v1155, 0.5
        %v1223 = vmul.f32 %v1156, 0.5
        %v1224 = vmul.f32 %v1157, 0.5
        %v1225 = vmul.f32 %v1158, 0.5
        %v1226 = vmul.f32 %v1159, 0.5
        %v1227 = vmul.f32 %v1160, 0.5
        %v1228 = vmul.f32 %v1161, 0.5
        %v1229 = vmul.f32 %v1162, 0.5
        %v1230 = vmul.f32 %v1163, 0.5
        %v1231 = vmul.f32 %v1164, 0.5
        %v1232 = vmul.f32 %v1165, 0.5
        %v1233 = vmul.f32 %v1166, 0.5
        %v1234 = vmul.f32 %v1167, 0.5
        %v1235 = vmul.f32 %v1168, 0.5
        %v1236 = vmul.f32 %v1169, 0.5
        %v1237 = vmul.f32 %v1170, 0.5
        %v1238 = vmul.f32 %v1171, 0.5
        %v1239 = vmul.f32 %v1172, 0.5
        %v1240 = vmul.f32 %v1173, 0.5
        %v1241 = vmul.f32 %v1174, 0.5
        %v1242 = vmul.f32 %v1175, 0.5
        %v1243 = vmul.f32 %v1176, 0.5
        %v1244 = vmul.f32 %v1177, 0.5
        %v1245 = vmul.f32 %v1178, 0.5
        %v1246 = vmul.f32 %v1214, 1.442695
        %v1247 = vpow.pop %v1246
        %v1248 = vmul.f32 %v1215, 1.442695
        %v1249 = vpow.pop %v1248
        %v1250 = vmul.f32 %v1216, 1.442695
        %v1251 = vpow.pop %v1250
        %v1252 = vmul.f32 %v1217, 1.442695
        %v1253 = vpow.pop %v1252
        %v1254 = vmul.f32 %v1218, 1.442695
        %v1255 = vpow.pop %v1254
        %v1256 = vmul.f32 %v1219, 1.442695
        %v1257 = vpow.pop %v1256
        %v1258 = vmul.f32 %v1220, 1.442695
        %v1259 = vpow.pop %v1258
        %v1260 = vmul.f32 %v1221, 1.442695
        %v1261 = vpow.pop %v1260
        %v1262 = vmul.f32 %v1222, 1.442695
        %v1263 = vpow.pop %v1262
        %v1264 = vmul.f32 %v1223, 1.442695
        %v1265 = vpow.pop %v1264
        %v1266 = vmul.f32 %v1224, 1.442695
        %v1267 = vpow.pop %v1266
        %v1268 = vmul.f32 %v1225, 1.442695
        %v1269 = vpow.pop %v1268
        %v1270 = vmul.f32 %v1226, 1.442695
        %v1271 = vpow.pop %v1270
        %v1272 = vmul.f32 %v1227, 1.442695
        %v1273 = vpow.pop %v1272
        %v1274 = vmul.f32 %v1228, 1.442695
        %v1275 = vpow.pop %v1274
        %v1276 = vmul.f32 %v1229, 1.442695
        %v1277 = vpow.pop %v1276
        %v1278 = vmul.f32 %v1230, 1.442695
        %v1279 = vpow.pop %v1278
        %v1280 = vmul.f32 %v1231, 1.442695
        %v1281 = vpow.pop %v1280
        %v1282 = vmul.f32 %v1232, 1.442695
        %v1283 = vpow.pop %v1282
        %v1284 = vmul.f32 %v1233, 1.442695
        %v1285 = vpow.pop %v1284
        %v1286 = vmul.f32 %v1234, 1.442695
        %v1287 = vpow.pop %v1286
        %v1288 = vmul.f32 %v1235, 1.442695
        %v1289 = vpow.pop %v1288
        %v1290 = vmul.f32 %v1236, 1.442695
        %v1291 = vpow.pop %v1290
        %v1292 = vmul.f32 %v1237, 1.442695
        %v1293 = vpow.pop %v1292
        %v1294 = vmul.f32 %v1238, 1.442695
        %v1295 = vpow.pop %v1294
        %v1296 = vmul.f32 %v1239, 1.442695
        %v1297 = vpow.pop %v1296
        %v1298 = vmul.f32 %v1240, 1.442695
        %v1299 = vpow.pop %v1298
        %v1300 = vmul.f32 %v1241, 1.442695
        %v1301 = vpow.pop %v1300
        %v1302 = vmul.f32 %v1242, 1.442695
        %v1303 = vpow.pop %v1302
        %v1304 = vmul.f32 %v1243, 1.442695
        %v1305 = vpow.pop %v1304
        %v1306 = vmul.f32 %v1244, 1.442695
        %v1307 = vpow.pop %v1306
        %v1308 = vmul.f32 %v1245, 1.442695
        %v1309 = vpow.pop %v1308
        %v1310 = vld [vmem:[%s509] sm:$0xff]
        %v1311 = vld [vmem:[%s509 + $0x8] sm:$0xff]
        %v1312 = vld [vmem:[%s509 + $0x10] sm:$0xff]
        %v1313 = vld [vmem:[%s509 + $0x18] sm:$0xff]
        %v1314 = vld [vmem:[%s509 + $0x20] sm:$0xff]
        %v1315 = vld [vmem:[%s509 + $0x28] sm:$0xff]
        %v1316 = vld [vmem:[%s509 + $0x30] sm:$0xff]
        %v1317 = vld [vmem:[%s509 + $0x38] sm:$0xff]
        %v1318 = vld [vmem:[%s509 + $0x40] sm:$0xff]
        %v1319 = vld [vmem:[%s509 + $0x48] sm:$0xff]
        %v1320 = vld [vmem:[%s509 + $0x50] sm:$0xff]
        %v1321 = vld [vmem:[%s509 + $0x58] sm:$0xff]
        %v1322 = vld [vmem:[%s509 + $0x60] sm:$0xff]
        %v1323 = vld [vmem:[%s509 + $0x68] sm:$0xff]
        %v1324 = vld [vmem:[%s509 + $0x70] sm:$0xff]
        %v1325 = vld [vmem:[%s509 + $0x78] sm:$0xff]
        %v1326 = vld [vmem:[%s509 + $0x80] sm:$0xff]
        %v1327 = vld [vmem:[%s509 + $0x88] sm:$0xff]
        %v1328 = vld [vmem:[%s509 + $0x90] sm:$0xff]
        %v1329 = vld [vmem:[%s509 + $0x98] sm:$0xff]
        %v1330 = vld [vmem:[%s509 + $0xa0] sm:$0xff]
        %v1331 = vld [vmem:[%s509 + $0xa8] sm:$0xff]
        %v1332 = vld [vmem:[%s509 + $0xb0] sm:$0xff]
        %v1333 = vld [vmem:[%s509 + $0xb8] sm:$0xff]
        %v1334 = vld [vmem:[%s509 + $0xc0] sm:$0xff]
        %v1335 = vld [vmem:[%s509 + $0xc8] sm:$0xff]
        %v1336 = vld [vmem:[%s509 + $0xd0] sm:$0xff]
        %v1337 = vld [vmem:[%s509 + $0xd8] sm:$0xff]
        %v1338 = vld [vmem:[%s509 + $0xe0] sm:$0xff]
        %v1339 = vld [vmem:[%s509 + $0xe8] sm:$0xff]
        %v1340 = vld [vmem:[%s509 + $0xf0] sm:$0xff]
        %v1341 = vld [vmem:[%s509 + $0xf8] sm:$0xff]
        %v1342 = vmul.f32 %v1247, %v1310
        %v1343 = vmul.f32 %v1249, %v1311
        %v1344 = vmul.f32 %v1251, %v1312
        %v1345 = vmul.f32 %v1253, %v1313
        %v1346 = vmul.f32 %v1255, %v1314
        %v1347 = vmul.f32 %v1257, %v1315
        %v1348 = vmul.f32 %v1259, %v1316
        %v1349 = vmul.f32 %v1261, %v1317
        %v1350 = vmul.f32 %v1263, %v1318
        %v1351 = vmul.f32 %v1265, %v1319
        %v1352 = vmul.f32 %v1267, %v1320
        %v1353 = vmul.f32 %v1269, %v1321
        %v1354 = vmul.f32 %v1271, %v1322
        %v1355 = vmul.f32 %v1273, %v1323
        %v1356 = vmul.f32 %v1275, %v1324
        %v1357 = vmul.f32 %v1277, %v1325
        %v1358 = vmul.f32 %v1279, %v1326
        %v1359 = vmul.f32 %v1281, %v1327
        %v1360 = vmul.f32 %v1283, %v1328
        %v1361 = vmul.f32 %v1285, %v1329
        %v1362 = vmul.f32 %v1287, %v1330
        %v1363 = vmul.f32 %v1289, %v1331
        %v1364 = vmul.f32 %v1291, %v1332
        %v1365 = vmul.f32 %v1293, %v1333
        %v1366 = vmul.f32 %v1295, %v1334
        %v1367 = vmul.f32 %v1297, %v1335
        %v1368 = vmul.f32 %v1299, %v1336
        %v1369 = vmul.f32 %v1301, %v1337
        %v1370 = vmul.f32 %v1303, %v1338
        %v1371 = vmul.f32 %v1305, %v1339
        %v1372 = vmul.f32 %v1307, %v1340
        %v1373 = vmul.f32 %v1309, %v1341
        %v1374 = vsel %vm1213, 1, 0
        %vm1375 = vcmp.eq.s32.totalorder %v1374, 1
        %v1376 = vsel %vm1375, %v1147, %v1342
        %v1377 = vsel %vm1375, %v1148, %v1343
        %v1378 = vsel %vm1375, %v1149, %v1344
        %v1379 = vsel %vm1375, %v1150, %v1345
        %v1380 = vsel %vm1375, %v1151, %v1346
        %v1381 = vsel %vm1375, %v1152, %v1347
        %v1382 = vsel %vm1375, %v1153, %v1348
        %v1383 = vsel %vm1375, %v1154, %v1349
        %v1384 = vsel %vm1375, %v1155, %v1350
        %v1385 = vsel %vm1375, %v1156, %v1351
        %v1386 = vsel %vm1375, %v1157, %v1352
        %v1387 = vsel %vm1375, %v1158, %v1353
        %v1388 = vsel %vm1375, %v1159, %v1354
        %v1389 = vsel %vm1375, %v1160, %v1355
        %v1390 = vsel %vm1375, %v1161, %v1356
        %v1391 = vsel %vm1375, %v1162, %v1357
        %v1392 = vsel %vm1375, %v1163, %v1358
        %v1393 = vsel %vm1375, %v1164, %v1359
        %v1394 = vsel %vm1375, %v1165, %v1360
        %v1395 = vsel %vm1375, %v1166, %v1361
        %v1396 = vsel %vm1375, %v1167, %v1362
        %v1397 = vsel %vm1375, %v1168, %v1363
        %v1398 = vsel %vm1375, %v1169, %v1364
        %v1399 = vsel %vm1375, %v1170, %v1365
        %v1400 = vsel %vm1375, %v1171, %v1366
        %v1401 = vsel %vm1375, %v1172, %v1367
        %v1402 = vsel %vm1375, %v1173, %v1368
        %v1403 = vsel %vm1375, %v1174, %v1369
        %v1404 = vsel %vm1375, %v1175, %v1370
        %v1405 = vsel %vm1375, %v1176, %v1371
        %v1406 = vsel %vm1375, %v1177, %v1372
        %v1407 = vsel %vm1375, %v1178, %v1373
        %v1408 = vpack.c.bf16 %v1377, %v1376
        %v1409 = vpack.c.bf16 %v1379, %v1378
        %v1410 = vpack.c.bf16 %v1381, %v1380
        %v1411 = vpack.c.bf16 %v1383, %v1382
        %v1412 = vpack.c.bf16 %v1385, %v1384
        %v1413 = vpack.c.bf16 %v1387, %v1386
        %v1414 = vpack.c.bf16 %v1389, %v1388
        %v1415 = vpack.c.bf16 %v1391, %v1390
        %v1416 = vpack.c.bf16 %v1393, %v1392
        %v1417 = vpack.c.bf16 %v1395, %v1394
        %v1418 = vpack.c.bf16 %v1397, %v1396
        %v1419 = vpack.c.bf16 %v1399, %v1398
        %v1420 = vpack.c.bf16 %v1401, %v1400
        %v1421 = vpack.c.bf16 %v1403, %v1402
        %v1422 = vpack.c.bf16 %v1405, %v1404
        %v1423 = vpack.c.bf16 %v1407, %v1406
        %v1424 = vld [vmem:[#allocation10] sm:$0xf]
        %v1425 = vld [vmem:[#allocation10 + $0x4] sm:$0xf]
        %v1426 = vld [vmem:[#allocation10 + $0x8] sm:$0xf]
        %v1427 = vld [vmem:[#allocation10 + $0xc] sm:$0xf]
        %v1428 = vld [vmem:[#allocation10 + $0x10] sm:$0xf]
        %v1429 = vld [vmem:[#allocation10 + $0x14] sm:$0xf]
        %v1430 = vld [vmem:[#allocation10 + $0x18] sm:$0xf]
        %v1431 = vld [vmem:[#allocation10 + $0x1c] sm:$0xf]
        %v1432 = vld [vmem:[#allocation10 + $0x20] sm:$0xf]
        %v1433 = vld [vmem:[#allocation10 + $0x24] sm:$0xf]
        %v1434 = vld [vmem:[#allocation10 + $0x28] sm:$0xf]
        %v1435 = vld [vmem:[#allocation10 + $0x2c] sm:$0xf]
        %v1436 = vld [vmem:[#allocation10 + $0x30] sm:$0xf]
        %v1437 = vld [vmem:[#allocation10 + $0x34] sm:$0xf]
        %v1438 = vld [vmem:[#allocation10 + $0x38] sm:$0xf]
        %v1439 = vld [vmem:[#allocation10 + $0x3c] sm:$0xf]
        %v1440 = vld [vmem:[%s7] sm:$0x1]
        %v1442 = vlaneseq
        %v1443 = vshrl.u32 %v1442, 7
        %v1444 = vsub.s32 0, %v1443
        %v1445 = vrot.slane %v1440, %v1444
        %v1463 = vunpack.c.l.b16 %v1424
        %v1464 = vunpack.c.l.b16 %v1425
        %v1465 = vunpack.c.l.b16 %v1426
        %v1466 = vunpack.c.l.b16 %v1427
        %v1467 = vunpack.c.l.b16 %v1428
        %v1468 = vunpack.c.l.b16 %v1429
        %v1469 = vunpack.c.l.b16 %v1430
        %v1470 = vunpack.c.l.b16 %v1431
        %v1471 = vunpack.c.l.b16 %v1432
        %v1472 = vunpack.c.l.b16 %v1433
        %v1473 = vunpack.c.l.b16 %v1434
        %v1474 = vunpack.c.l.b16 %v1435
        %v1475 = vunpack.c.l.b16 %v1436
        %v1476 = vunpack.c.l.b16 %v1437
        %v1477 = vunpack.c.l.b16 %v1438
        %v1478 = vunpack.c.l.b16 %v1439
        %v1479 = vpack.c.b16 %v1464, %v1463
        %v1480 = vpack.c.b16 %v1466, %v1465
        %v1481 = vpack.c.b16 %v1468, %v1467
        %v1482 = vpack.c.b16 %v1470, %v1469
        %v1483 = vpack.c.b16 %v1472, %v1471
        %v1484 = vpack.c.b16 %v1474, %v1473
        %v1485 = vpack.c.b16 %v1476, %v1475
        %v1486 = vpack.c.b16 %v1478, %v1477
        %1495 = vmatprep.subr.bf16.mxu0 0
        %1496 = vmatpush1.bf16.msra.mxu0 %v1479
        %1497 = vmatprep.subr.bf16.mxu0 0
        %1498 = vmatpush1.bf16.msra.mxu0 %v1480
        %1499 = vmatprep.subr.bf16.mxu0 0
        %1500 = vmatpush1.bf16.msra.mxu0 %v1481
        %1501 = vmatprep.subr.bf16.mxu0 0
        %1502 = vmatpush1.bf16.msra.mxu0 %v1482
        %1503 = vmatprep.subr.bf16.mxu0 0
        %1504 = vmatpush1.bf16.msra.mxu0 %v1483
        %1505 = vmatprep.subr.bf16.mxu0 0
        %1506 = vmatpush1.bf16.msra.mxu0 %v1484
        %1507 = vmatprep.subr.bf16.mxu0 0
        %1508 = vmatpush1.bf16.msra.mxu0 %v1485
        %1509 = vmatprep.subr.bf16.mxu0 0
        %1510 = vmatpush1.bf16.msra.mxu0 %v1486
        %1511 = vmatprep.subr.bf16.mxu0 0
        %1512 = vmatpush1.bf16.msra.mxu0 0
        %1513 = vmatprep.subr.bf16.mxu0 0
        %1514 = vmatpush1.bf16.msra.mxu0 0
        %1515 = vmatprep.subr.bf16.mxu0 0
        %1516 = vmatpush1.bf16.msra.mxu0 0
        %1517 = vmatprep.subr.bf16.mxu0 0
        %1518 = vmatpush1.bf16.msra.mxu0 0
        %1519 = vmatprep.subr.bf16.mxu0 0
        %1520 = vmatpush1.bf16.msra.mxu0 0
        %1521 = vmatprep.subr.bf16.mxu0 0
        %1522 = vmatpush1.bf16.msra.mxu0 0
        %1523 = vmatprep.subr.bf16.mxu0 0
        %1524 = vmatpush1.bf16.msra.mxu0 0
        %1525 = vmatprep.subr.bf16.mxu0 0
        %1526 = vmatpush1.bf16.msra.mxu0 0
        %1527 = vmatprep.mubr.bf16.mxu0 0
        %1528 = vmatmul.mubr.bf16.gmra.mrb[0].mxu0 %v1408
        %v1529 = vpop.f32.mrb[0].mxu0
        %v1530 = vadd.f32 %v1445, %v1529
        %v1531 = vpop.f32.mrb[0].mxu0
        %v1532 = vpop.f32.mrb[0].mxu0
        %v1533 = vadd.f32 %v1445, %v1532
        %v1534 = vpop.f32.mrb[0].mxu0
        %1535 = vmatprep.mubr.bf16.mxu0 0
        %1536 = vmatmul.mubr.bf16.gmra.mrb[0].mxu0 %v1409
        %v1537 = vpop.f32.mrb[0].mxu0
        %v1538 = vadd.f32 %v1445, %v1537
        %v1539 = vpop.f32.mrb[0].mxu0
        %v1540 = vpop.f32.mrb[0].mxu0
        %v1541 = vadd.f32 %v1445, %v1540
        %v1542 = vpop.f32.mrb[0].mxu0
        %1543 = vmatprep.mubr.bf16.mxu0 0
        %1544 = vmatmul.mubr.bf16.gmra.mrb[0].mxu0 %v1410
        %v1545 = vpop.f32.mrb[0].mxu0
        %v1546 = vadd.f32 %v1445, %v1545
        %v1547 = vpop.f32.mrb[0].mxu0
        %v1548 = vpop.f32.mrb[0].mxu0
        %v1549 = vadd.f32 %v1445, %v1548
        %v1550 = vpop.f32.mrb[0].mxu0
        %1551 = vmatprep.mubr.bf16.mxu0 0
        %1552 = vmatmul.mubr.bf16.gmra.mrb[0].mxu0 %v1411
        %v1553 = vpop.f32.mrb[0].mxu0
        %v1554 = vadd.f32 %v1445, %v1553
        %v1555 = vpop.f32.mrb[0].mxu0
        %v1556 = vpop.f32.mrb[0].mxu0
        %v1557 = vadd.f32 %v1445, %v1556
        %v1558 = vpop.f32.mrb[0].mxu0
        %1559 = vmatprep.mubr.bf16.mxu0 0
        %1560 = vmatmul.mubr.bf16.gmra.mrb[0].mxu0 %v1412
        %v1561 = vpop.f32.mrb[0].mxu0
        %v1562 = vadd.f32 %v1445, %v1561
        %v1563 = vpop.f32.mrb[0].mxu0
        %v1564 = vpop.f32.mrb[0].mxu0
        %v1565 = vadd.f32 %v1445, %v1564
        %v1566 = vpop.f32.mrb[0].mxu0
        %1567 = vmatprep.mubr.bf16.mxu0 0
        %1568 = vmatmul.mubr.bf16.gmra.mrb[0].mxu0 %v1413
        %v1569 = vpop.f32.mrb[0].mxu0
        %v1570 = vadd.f32 %v1445, %v1569
        %v1571 = vpop.f32.mrb[0].mxu0
        %v1572 = vpop.f32.mrb[0].mxu0
        %v1573 = vadd.f32 %v1445, %v1572
        %v1574 = vpop.f32.mrb[0].mxu0
        %1575 = vmatprep.mubr.bf16.mxu0 0
        %1576 = vmatmul.mubr.bf16.gmra.mrb[0].mxu0 %v1414
        %v1577 = vpop.f32.mrb[0].mxu0
        %v1578 = vadd.f32 %v1445, %v1577
        %v1579 = vpop.f32.mrb[0].mxu0
        %v1580 = vpop.f32.mrb[0].mxu0
        %v1581 = vadd.f32 %v1445, %v1580
        %v1582 = vpop.f32.mrb[0].mxu0
        %1583 = vmatprep.mubr.bf16.mxu0 0
        %1584 = vmatmul.mubr.bf16.gmra.mrb[0].mxu0 %v1415
        %v1585 = vpop.f32.mrb[0].mxu0
        %v1586 = vadd.f32 %v1445, %v1585
        %v1587 = vpop.f32.mrb[0].mxu0
        %v1588 = vpop.f32.mrb[0].mxu0
        %v1589 = vadd.f32 %v1445, %v1588
        %v1590 = vpop.f32.mrb[0].mxu0
        %1591 = vmatprep.mubr.bf16.mxu0 0
        %1592 = vmatmul.mubr.bf16.gmra.mrb[0].mxu0 %v1416
        %v1593 = vpop.f32.mrb[0].mxu0
        %v1594 = vadd.f32 %v1445, %v1593
        %v1595 = vpop.f32.mrb[0].mxu0
        %v1596 = vpop.f32.mrb[0].mxu0
        %v1597 = vadd.f32 %v1445, %v1596
        %v1598 = vpop.f32.mrb[0].mxu0
        %1599 = vmatprep.mubr.bf16.mxu0 0
        %1600 = vmatmul.mubr.bf16.gmra.mrb[0].mxu0 %v1417
        %v1601 = vpop.f32.mrb[0].mxu0
        %v1602 = vadd.f32 %v1445, %v1601
        %v1603 = vpop.f32.mrb[0].mxu0
        %v1604 = vpop.f32.mrb[0].mxu0
        %v1605 = vadd.f32 %v1445, %v1604
        %v1606 = vpop.f32.mrb[0].mxu0
        %1607 = vmatprep.mubr.bf16.mxu0 0
        %1608 = vmatmul.mubr.bf16.gmra.mrb[0].mxu0 %v1418
        %v1609 = vpop.f32.mrb[0].mxu0
        %v1610 = vadd.f32 %v1445, %v1609
        %v1611 = vpop.f32.mrb[0].mxu0
        %v1612 = vpop.f32.mrb[0].mxu0
        %v1613 = vadd.f32 %v1445, %v1612
        %v1614 = vpop.f32.mrb[0].mxu0
        %1615 = vmatprep.mubr.bf16.mxu0 0
        %1616 = vmatmul.mubr.bf16.gmra.mrb[0].mxu0 %v1419
        %v1617 = vpop.f32.mrb[0].mxu0
        %v1618 = vadd.f32 %v1445, %v1617
        %v1619 = vpop.f32.mrb[0].mxu0
        %v1620 = vpop.f32.mrb[0].mxu0
        %v1621 = vadd.f32 %v1445, %v1620
        %v1622 = vpop.f32.mrb[0].mxu0
        %1623 = vmatprep.mubr.bf16.mxu0 0
        %1624 = vmatmul.mubr.bf16.gmra.mrb[0].mxu0 %v1420
        %v1625 = vpop.f32.mrb[0].mxu0
        %v1626 = vadd.f32 %v1445, %v1625
        %v1627 = vpop.f32.mrb[0].mxu0
        %v1628 = vpop.f32.mrb[0].mxu0
        %v1629 = vadd.f32 %v1445, %v1628
        %v1630 = vpop.f32.mrb[0].mxu0
        %1631 = vmatprep.mubr.bf16.mxu0 0
        %1632 = vmatmul.mubr.bf16.gmra.mrb[0].mxu0 %v1421
        %v1633 = vpop.f32.mrb[0].mxu0
        %v1634 = vadd.f32 %v1445, %v1633
        %v1635 = vpop.f32.mrb[0].mxu0
        %v1636 = vpop.f32.mrb[0].mxu0
        %v1637 = vadd.f32 %v1445, %v1636
        %v1638 = vpop.f32.mrb[0].mxu0
        %1639 = vmatprep.mubr.bf16.mxu0 0
        %1640 = vmatmul.mubr.bf16.gmra.mrb[0].mxu0 %v1422
        %v1641 = vpop.f32.mrb[0].mxu0
        %v1642 = vadd.f32 %v1445, %v1641
        %v1643 = vpop.f32.mrb[0].mxu0
        %v1644 = vpop.f32.mrb[0].mxu0
        %v1645 = vadd.f32 %v1445, %v1644
        %v1646 = vpop.f32.mrb[0].mxu0
        %1647 = vmatprep.mubr.bf16.mxu0 0
        %1648 = vmatmul.mubr.bf16.gmra.mrb[0].mxu0 %v1423
        %v1649 = vpop.f32.mrb[0].mxu0
        %v1650 = vadd.f32 %v1445, %v1649
        %v1651 = vpop.f32.mrb[0].mxu0
        %v1652 = vpop.f32.mrb[0].mxu0
        %v1653 = vadd.f32 %v1445, %v1652
        %v1654 = vpop.f32.mrb[0].mxu0
        %1655 = vdwg.mxu0
        %v1656 = vmax.f32 %v1530, 0.0
        %v1657 = vmax.f32 %v1533, 0.0
        %v1658 = vmax.f32 %v1538, 0.0
        %v1659 = vmax.f32 %v1541, 0.0
        %v1660 = vmax.f32 %v1546, 0.0
        %v1661 = vmax.f32 %v1549, 0.0
        %v1662 = vmax.f32 %v1554, 0.0
        %v1663 = vmax.f32 %v1557, 0.0
        %v1664 = vmax.f32 %v1562, 0.0
        %v1665 = vmax.f32 %v1565, 0.0
        %v1666 = vmax.f32 %v1570, 0.0
        %v1667 = vmax.f32 %v1573, 0.0
        %v1668 = vmax.f32 %v1578, 0.0
        %v1669 = vmax.f32 %v1581, 0.0
        %v1670 = vmax.f32 %v1586, 0.0
        %v1671 = vmax.f32 %v1589, 0.0
        %v1672 = vmax.f32 %v1594, 0.0
        %v1673 = vmax.f32 %v1597, 0.0
        %v1674 = vmax.f32 %v1602, 0.0
        %v1675 = vmax.f32 %v1605, 0.0
        %v1676 = vmax.f32 %v1610, 0.0
        %v1677 = vmax.f32 %v1613, 0.0
        %v1678 = vmax.f32 %v1618, 0.0
        %v1679 = vmax.f32 %v1621, 0.0
        %v1680 = vmax.f32 %v1626, 0.0
        %v1681 = vmax.f32 %v1629, 0.0
        %v1682 = vmax.f32 %v1634, 0.0
        %v1683 = vmax.f32 %v1637, 0.0
        %v1684 = vmax.f32 %v1642, 0.0
        %v1685 = vmax.f32 %v1645, 0.0
        %v1686 = vmax.f32 %v1650, 0.0
        %v1687 = vmax.f32 %v1653, 0.0
        %v1688 = vpack.c.bf16 %v1657, %v1656
        %v1689 = vpack.c.bf16 %v1659, %v1658
        %v1690 = vpack.c.bf16 %v1661, %v1660
        %v1691 = vpack.c.bf16 %v1663, %v1662
        %v1692 = vpack.c.bf16 %v1665, %v1664
        %v1693 = vpack.c.bf16 %v1667, %v1666
        %v1694 = vpack.c.bf16 %v1669, %v1668
        %v1695 = vpack.c.bf16 %v1671, %v1670
        %v1696 = vpack.c.bf16 %v1673, %v1672
        %v1697 = vpack.c.bf16 %v1675, %v1674
        %v1698 = vpack.c.bf16 %v1677, %v1676
        %v1699 = vpack.c.bf16 %v1679, %v1678
        %v1700 = vpack.c.bf16 %v1681, %v1680
        %v1701 = vpack.c.bf16 %v1683, %v1682
        %v1702 = vpack.c.bf16 %v1685, %v1684
        %v1703 = vpack.c.bf16 %v1687, %v1686
        %v1704 = vld [vmem:[#allocation11] sm:$0xf]
        %v1705 = vld [vmem:[#allocation11 + $0x4] sm:$0xf]
        %v1706 = vld [vmem:[#allocation11 + $0x8] sm:$0xf]
        %v1707 = vld [vmem:[#allocation11 + $0xc] sm:$0xf]
        %v1708 = vld [vmem:[#allocation11 + $0x10] sm:$0xf]
        %v1709 = vld [vmem:[#allocation11 + $0x14] sm:$0xf]
        %v1710 = vld [vmem:[#allocation11 + $0x18] sm:$0xf]
        %v1711 = vld [vmem:[#allocation11 + $0x1c] sm:$0xf]
        %v1712 = vld [vmem:[#allocation11 + $0x20] sm:$0xf]
        %v1713 = vld [vmem:[#allocation11 + $0x24] sm:$0xf]
        %v1714 = vld [vmem:[#allocation11 + $0x28] sm:$0xf]
        %v1715 = vld [vmem:[#allocation11 + $0x2c] sm:$0xf]
        %v1716 = vld [vmem:[#allocation11 + $0x30] sm:$0xf]
        %v1717 = vld [vmem:[#allocation11 + $0x34] sm:$0xf]
        %v1718 = vld [vmem:[#allocation11 + $0x38] sm:$0xf]
        %v1719 = vld [vmem:[#allocation11 + $0x3c] sm:$0xf]
        %v1720 = vld [vmem:[%s9] sm:$0x1]
        %v1722 = vlaneseq
        %v1723 = vshrl.u32 %v1722, 7
        %v1724 = vsub.s32 0, %v1723
        %v1725 = vrot.slane %v1720, %v1724
        %v1743 = vunpack.c.l.b16 %v1704
        %v1744 = vunpack.c.l.b16 %v1705
        %v1745 = vunpack.c.l.b16 %v1706
        %v1746 = vunpack.c.l.b16 %v1707
        %v1747 = vunpack.c.l.b16 %v1708
        %v1748 = vunpack.c.l.b16 %v1709
        %v1749 = vunpack.c.l.b16 %v1710
        %v1750 = vunpack.c.l.b16 %v1711
        %v1751 = vunpack.c.l.b16 %v1712
        %v1752 = vunpack.c.l.b16 %v1713
        %v1753 = vunpack.c.l.b16 %v1714
        %v1754 = vunpack.c.l.b16 %v1715
        %v1755 = vunpack.c.l.b16 %v1716
        %v1756 = vunpack.c.l.b16 %v1717
        %v1757 = vunpack.c.l.b16 %v1718
        %v1758 = vunpack.c.l.b16 %v1719
        %v1759 = vpack.c.b16 %v1744, %v1743
        %v1760 = vpack.c.b16 %v1746, %v1745
        %v1761 = vpack.c.b16 %v1748, %v1747
        %v1762 = vpack.c.b16 %v1750, %v1749
        %v1763 = vpack.c.b16 %v1752, %v1751
        %v1764 = vpack.c.b16 %v1754, %v1753
        %v1765 = vpack.c.b16 %v1756, %v1755
        %v1766 = vpack.c.b16 %v1758, %v1757
        %1775 = vmatprep.subr.bf16.mxu0 0
        %1776 = vmatpush1.bf16.msra.mxu0 %v1759
        %1777 = vmatprep.subr.bf16.mxu0 0
        %1778 = vmatpush1.bf16.msra.mxu0 %v1760
        %1779 = vmatprep.subr.bf16.mxu0 0
        %1780 = vmatpush1.bf16.msra.mxu0 %v1761
        %1781 = vmatprep.subr.bf16.mxu0 0
        %1782 = vmatpush1.bf16.msra.mxu0 %v1762
        %1783 = vmatprep.subr.bf16.mxu0 0
        %1784 = vmatpush1.bf16.msra.mxu0 %v1763
        %1785 = vmatprep.subr.bf16.mxu0 0
        %1786 = vmatpush1.bf16.msra.mxu0 %v1764
        %1787 = vmatprep.subr.bf16.mxu0 0
        %1788 = vmatpush1.bf16.msra.mxu0 %v1765
        %1789 = vmatprep.subr.bf16.mxu0 0
        %1790 = vmatpush1.bf16.msra.mxu0 %v1766
        %1791 = vmatprep.subr.bf16.mxu0 0
        %1792 = vmatpush1.bf16.msra.mxu0 0
        %1793 = vmatprep.subr.bf16.mxu0 0
        %1794 = vmatpush1.bf16.msra.mxu0 0
        %1795 = vmatprep.subr.bf16.mxu0 0
        %1796 = vmatpush1.bf16.msra.mxu0 0
        %1797 = vmatprep.subr.bf16.mxu0 0
        %1798 = vmatpush1.bf16.msra.mxu0 0
        %1799 = vmatprep.subr.bf16.mxu0 0
        %1800 = vmatpush1.bf16.msra.mxu0 0
        %1801 = vmatprep.subr.bf16.mxu0 0
        %1802 = vmatpush1.bf16.msra.mxu0 0
        %1803 = vmatprep.subr.bf16.mxu0 0
        %1804 = vmatpush1.bf16.msra.mxu0 0
        %1805 = vmatprep.subr.bf16.mxu0 0
        %1806 = vmatpush1.bf16.msra.mxu0 0
        %1807 = vmatprep.mubr.bf16.mxu0 0
        %1808 = vmatmul.mubr.bf16.gmra.mrb[0].mxu0 %v1688
        %v1809 = vpop.f32.mrb[0].mxu0
        %v1810 = vadd.f32 %v1725, %v1809
        %v1811 = vpop.f32.mrb[0].mxu0
        %v1812 = vpop.f32.mrb[0].mxu0
        %v1813 = vadd.f32 %v1725, %v1812
        %v1814 = vpop.f32.mrb[0].mxu0
        %1815 = vmatprep.mubr.bf16.mxu0 0
        %1816 = vmatmul.mubr.bf16.gmra.mrb[0].mxu0 %v1689
        %v1817 = vpop.f32.mrb[0].mxu0
        %v1818 = vadd.f32 %v1725, %v1817
        %v1819 = vpop.f32.mrb[0].mxu0
        %v1820 = vpop.f32.mrb[0].mxu0
        %v1821 = vadd.f32 %v1725, %v1820
        %v1822 = vpop.f32.mrb[0].mxu0
        %1823 = vmatprep.mubr.bf16.mxu0 0
        %1824 = vmatmul.mubr.bf16.gmra.mrb[0].mxu0 %v1690
        %v1825 = vpop.f32.mrb[0].mxu0
        %v1826 = vadd.f32 %v1725, %v1825
        %v1827 = vpop.f32.mrb[0].mxu0
        %v1828 = vpop.f32.mrb[0].mxu0
        %v1829 = vadd.f32 %v1725, %v1828
        %v1830 = vpop.f32.mrb[0].mxu0
        %1831 = vmatprep.mubr.bf16.mxu0 0
        %1832 = vmatmul.mubr.bf16.gmra.mrb[0].mxu0 %v1691
        %v1833 = vpop.f32.mrb[0].mxu0
        %v1834 = vadd.f32 %v1725, %v1833
        %v1835 = vpop.f32.mrb[0].mxu0
        %v1836 = vpop.f32.mrb[0].mxu0
        %v1837 = vadd.f32 %v1725, %v1836
        %v1838 = vpop.f32.mrb[0].mxu0
        %1839 = vmatprep.mubr.bf16.mxu0 0
        %1840 = vmatmul.mubr.bf16.gmra.mrb[0].mxu0 %v1692
        %v1841 = vpop.f32.mrb[0].mxu0
        %v1842 = vadd.f32 %v1725, %v1841
        %v1843 = vpop.f32.mrb[0].mxu0
        %v1844 = vpop.f32.mrb[0].mxu0
        %v1845 = vadd.f32 %v1725, %v1844
        %v1846 = vpop.f32.mrb[0].mxu0
        %1847 = vmatprep.mubr.bf16.mxu0 0
        %1848 = vmatmul.mubr.bf16.gmra.mrb[0].mxu0 %v1693
        %v1849 = vpop.f32.mrb[0].mxu0
        %v1850 = vadd.f32 %v1725, %v1849
        %v1851 = vpop.f32.mrb[0].mxu0
        %v1852 = vpop.f32.mrb[0].mxu0
        %v1853 = vadd.f32 %v1725, %v1852
        %v1854 = vpop.f32.mrb[0].mxu0
        %1855 = vmatprep.mubr.bf16.mxu0 0
        %1856 = vmatmul.mubr.bf16.gmra.mrb[0].mxu0 %v1694
        %v1857 = vpop.f32.mrb[0].mxu0
        %v1858 = vadd.f32 %v1725, %v1857
        %v1859 = vpop.f32.mrb[0].mxu0
        %v1860 = vpop.f32.mrb[0].mxu0
        %v1861 = vadd.f32 %v1725, %v1860
        %v1862 = vpop.f32.mrb[0].mxu0
        %1863 = vmatprep.mubr.bf16.mxu0 0
        %1864 = vmatmul.mubr.bf16.gmra.mrb[0].mxu0 %v1695
        %v1865 = vpop.f32.mrb[0].mxu0
        %v1866 = vadd.f32 %v1725, %v1865
        %v1867 = vpop.f32.mrb[0].mxu0
        %v1868 = vpop.f32.mrb[0].mxu0
        %v1869 = vadd.f32 %v1725, %v1868
        %v1870 = vpop.f32.mrb[0].mxu0
        %1871 = vmatprep.mubr.bf16.mxu0 0
        %1872 = vmatmul.mubr.bf16.gmra.mrb[0].mxu0 %v1696
        %v1873 = vpop.f32.mrb[0].mxu0
        %v1874 = vadd.f32 %v1725, %v1873
        %v1875 = vpop.f32.mrb[0].mxu0
        %v1876 = vpop.f32.mrb[0].mxu0
        %v1877 = vadd.f32 %v1725, %v1876
        %v1878 = vpop.f32.mrb[0].mxu0
        %1879 = vmatprep.mubr.bf16.mxu0 0
        %1880 = vmatmul.mubr.bf16.gmra.mrb[0].mxu0 %v1697
        %v1881 = vpop.f32.mrb[0].mxu0
        %v1882 = vadd.f32 %v1725, %v1881
        %v1883 = vpop.f32.mrb[0].mxu0
        %v1884 = vpop.f32.mrb[0].mxu0
        %v1885 = vadd.f32 %v1725, %v1884
        %v1886 = vpop.f32.mrb[0].mxu0
        %1887 = vmatprep.mubr.bf16.mxu0 0
        %1888 = vmatmul.mubr.bf16.gmra.mrb[0].mxu0 %v1698
        %v1889 = vpop.f32.mrb[0].mxu0
        %v1890 = vadd.f32 %v1725, %v1889
        %v1891 = vpop.f32.mrb[0].mxu0
        %v1892 = vpop.f32.mrb[0].mxu0
        %v1893 = vadd.f32 %v1725, %v1892
        %v1894 = vpop.f32.mrb[0].mxu0
        %1895 = vmatprep.mubr.bf16.mxu0 0
        %1896 = vmatmul.mubr.bf16.gmra.mrb[0].mxu0 %v1699
        %v1897 = vpop.f32.mrb[0].mxu0
        %v1898 = vadd.f32 %v1725, %v1897
        %v1899 = vpop.f32.mrb[0].mxu0
        %v1900 = vpop.f32.mrb[0].mxu0
        %v1901 = vadd.f32 %v1725, %v1900
        %v1902 = vpop.f32.mrb[0].mxu0
        %1903 = vmatprep.mubr.bf16.mxu0 0
        %1904 = vmatmul.mubr.bf16.gmra.mrb[0].mxu0 %v1700
        %v1905 = vpop.f32.mrb[0].mxu0
        %v1906 = vadd.f32 %v1725, %v1905
        %v1907 = vpop.f32.mrb[0].mxu0
        %v1908 = vpop.f32.mrb[0].mxu0
        %v1909 = vadd.f32 %v1725, %v1908
        %v1910 = vpop.f32.mrb[0].mxu0
        %1911 = vmatprep.mubr.bf16.mxu0 0
        %1912 = vmatmul.mubr.bf16.gmra.mrb[0].mxu0 %v1701
        %v1913 = vpop.f32.mrb[0].mxu0
        %v1914 = vadd.f32 %v1725, %v1913
        %v1915 = vpop.f32.mrb[0].mxu0
        %v1916 = vpop.f32.mrb[0].mxu0
        %v1917 = vadd.f32 %v1725, %v1916
        %v1918 = vpop.f32.mrb[0].mxu0
        %1919 = vmatprep.mubr.bf16.mxu0 0
        %1920 = vmatmul.mubr.bf16.gmra.mrb[0].mxu0 %v1702
        %v1921 = vpop.f32.mrb[0].mxu0
        %v1922 = vadd.f32 %v1725, %v1921
        %v1923 = vpop.f32.mrb[0].mxu0
        %v1924 = vpop.f32.mrb[0].mxu0
        %v1925 = vadd.f32 %v1725, %v1924
        %v1926 = vpop.f32.mrb[0].mxu0
        %1927 = vmatprep.mubr.bf16.mxu0 0
        %1928 = vmatmul.mubr.bf16.gmra.mrb[0].mxu0 %v1703
        %v1929 = vpop.f32.mrb[0].mxu0
        %v1930 = vadd.f32 %v1725, %v1929
        %v1931 = vpop.f32.mrb[0].mxu0
        %v1932 = vpop.f32.mrb[0].mxu0
        %v1933 = vadd.f32 %v1725, %v1932
        %v1934 = vpop.f32.mrb[0].mxu0
        %1935 = vdwg.mxu0
        %v1936 = vmax.f32 %v1810, 0.0
        %v1937 = vmax.f32 %v1813, 0.0
        %v1938 = vmax.f32 %v1818, 0.0
        %v1939 = vmax.f32 %v1821, 0.0
        %v1940 = vmax.f32 %v1826, 0.0
        %v1941 = vmax.f32 %v1829, 0.0
        %v1942 = vmax.f32 %v1834, 0.0
        %v1943 = vmax.f32 %v1837, 0.0
        %v1944 = vmax.f32 %v1842, 0.0
        %v1945 = vmax.f32 %v1845, 0.0
        %v1946 = vmax.f32 %v1850, 0.0
        %v1947 = vmax.f32 %v1853, 0.0
        %v1948 = vmax.f32 %v1858, 0.0
        %v1949 = vmax.f32 %v1861, 0.0
        %v1950 = vmax.f32 %v1866, 0.0
        %v1951 = vmax.f32 %v1869, 0.0
        %v1952 = vmax.f32 %v1874, 0.0
        %v1953 = vmax.f32 %v1877, 0.0
        %v1954 = vmax.f32 %v1882, 0.0
        %v1955 = vmax.f32 %v1885, 0.0
        %v1956 = vmax.f32 %v1890, 0.0
        %v1957 = vmax.f32 %v1893, 0.0
        %v1958 = vmax.f32 %v1898, 0.0
        %v1959 = vmax.f32 %v1901, 0.0
        %v1960 = vmax.f32 %v1906, 0.0
        %v1961 = vmax.f32 %v1909, 0.0
        %v1962 = vmax.f32 %v1914, 0.0
        %v1963 = vmax.f32 %v1917, 0.0
        %v1964 = vmax.f32 %v1922, 0.0
        %v1965 = vmax.f32 %v1925, 0.0
        %v1966 = vmax.f32 %v1930, 0.0
        %v1967 = vmax.f32 %v1933, 0.0
        %v1968 = vpack.c.bf16 %v1937, %v1936
        %v1969 = vpack.c.bf16 %v1939, %v1938
        %v1970 = vpack.c.bf16 %v1941, %v1940
        %v1971 = vpack.c.bf16 %v1943, %v1942
        %v1972 = vpack.c.bf16 %v1945, %v1944
        %v1973 = vpack.c.bf16 %v1947, %v1946
        %v1974 = vpack.c.bf16 %v1949, %v1948
        %v1975 = vpack.c.bf16 %v1951, %v1950
        %v1976 = vpack.c.bf16 %v1953, %v1952
        %v1977 = vpack.c.bf16 %v1955, %v1954
        %v1978 = vpack.c.bf16 %v1957, %v1956
        %v1979 = vpack.c.bf16 %v1959, %v1958
        %v1980 = vpack.c.bf16 %v1961, %v1960
        %v1981 = vpack.c.bf16 %v1963, %v1962
        %v1982 = vpack.c.bf16 %v1965, %v1964
        %v1983 = vpack.c.bf16 %v1967, %v1966
        %v1984 = vld [vmem:[#allocation13] sm:$0xf]
        %v1985 = vld [vmem:[#allocation13 + $0x4] sm:$0xf]
        %v1986 = vld [vmem:[#allocation13 + $0x8] sm:$0xf]
        %v1987 = vld [vmem:[#allocation13 + $0xc] sm:$0xf]
        %v1988 = vld [vmem:[#allocation13 + $0x10] sm:$0xf]
        %v1989 = vld [vmem:[#allocation13 + $0x14] sm:$0xf]
        %v1990 = vld [vmem:[#allocation13 + $0x18] sm:$0xf]
        %v1991 = vld [vmem:[#allocation13 + $0x1c] sm:$0xf]
        %v1992 = vld [vmem:[#allocation13 + $0x20] sm:$0xf]
        %v1993 = vld [vmem:[#allocation13 + $0x24] sm:$0xf]
        %v1994 = vld [vmem:[#allocation13 + $0x28] sm:$0xf]
        %v1995 = vld [vmem:[#allocation13 + $0x2c] sm:$0xf]
        %v1996 = vld [vmem:[#allocation13 + $0x30] sm:$0xf]
        %v1997 = vld [vmem:[#allocation13 + $0x34] sm:$0xf]
        %v1998 = vld [vmem:[#allocation13 + $0x38] sm:$0xf]
        %v1999 = vld [vmem:[#allocation13 + $0x3c] sm:$0xf]
        %v2000 = vld [vmem:[%s11] sm:$0x1]
        %v2002 = vlaneseq
        %v2003 = vshrl.u32 %v2002, 7
        %v2004 = vsub.s32 0, %v2003
        %v2005 = vrot.slane %v2000, %v2004
        %v2023 = vunpack.c.l.b16 %v1984
        %v2024 = vunpack.c.l.b16 %v1985
        %v2025 = vunpack.c.l.b16 %v1986
        %v2026 = vunpack.c.l.b16 %v1987
        %v2027 = vunpack.c.l.b16 %v1988
        %v2028 = vunpack.c.l.b16 %v1989
        %v2029 = vunpack.c.l.b16 %v1990
        %v2030 = vunpack.c.l.b16 %v1991
        %v2031 = vunpack.c.l.b16 %v1992
        %v2032 = vunpack.c.l.b16 %v1993
        %v2033 = vunpack.c.l.b16 %v1994
        %v2034 = vunpack.c.l.b16 %v1995
        %v2035 = vunpack.c.l.b16 %v1996
        %v2036 = vunpack.c.l.b16 %v1997
        %v2037 = vunpack.c.l.b16 %v1998
        %v2038 = vunpack.c.l.b16 %v1999
        %v2039 = vpack.c.b16 %v2024, %v2023
        %v2040 = vpack.c.b16 %v2026, %v2025
        %v2041 = vpack.c.b16 %v2028, %v2027
        %v2042 = vpack.c.b16 %v2030, %v2029
        %v2043 = vpack.c.b16 %v2032, %v2031
        %v2044 = vpack.c.b16 %v2034, %v2033
        %v2045 = vpack.c.b16 %v2036, %v2035
        %v2046 = vpack.c.b16 %v2038, %v2037
        %2055 = vmatprep.subr.bf16.mxu0 0
        %2056 = vmatpush1.bf16.msra.mxu0 %v2039
        %2057 = vmatprep.subr.bf16.mxu0 0
        %2058 = vmatpush1.bf16.msra.mxu0 %v2040
        %2059 = vmatprep.subr.bf16.mxu0 0
        %2060 = vmatpush1.bf16.msra.mxu0 %v2041
        %2061 = vmatprep.subr.bf16.mxu0 0
        %2062 = vmatpush1.bf16.msra.mxu0 %v2042
        %2063 = vmatprep.subr.bf16.mxu0 0
        %2064 = vmatpush1.bf16.msra.mxu0 %v2043
        %2065 = vmatprep.subr.bf16.mxu0 0
        %2066 = vmatpush1.bf16.msra.mxu0 %v2044
        %2067 = vmatprep.subr.bf16.mxu0 0
        %2068 = vmatpush1.bf16.msra.mxu0 %v2045
        %2069 = vmatprep.subr.bf16.mxu0 0
        %2070 = vmatpush1.bf16.msra.mxu0 %v2046
        %2071 = vmatprep.subr.bf16.mxu0 0
        %2072 = vmatpush1.bf16.msra.mxu0 0
        %2073 = vmatprep.subr.bf16.mxu0 0
        %2074 = vmatpush1.bf16.msra.mxu0 0
        %2075 = vmatprep.subr.bf16.mxu0 0
        %2076 = vmatpush1.bf16.msra.mxu0 0
        %2077 = vmatprep.subr.bf16.mxu0 0
        %2078 = vmatpush1.bf16.msra.mxu0 0
        %2079 = vmatprep.subr.bf16.mxu0 0
        %2080 = vmatpush1.bf16.msra.mxu0 0
        %2081 = vmatprep.subr.bf16.mxu0 0
        %2082 = vmatpush1.bf16.msra.mxu0 0
        %2083 = vmatprep.subr.bf16.mxu0 0
        %2084 = vmatpush1.bf16.msra.mxu0 0
        %2085 = vmatprep.subr.bf16.mxu0 0
        %2086 = vmatpush1.bf16.msra.mxu0 0
        %2087 = vmatprep.mubr.bf16.mxu0 0
        %2088 = vmatmul.mubr.bf16.gmra.mrb[0].mxu0 %v1968
        %v2089 = vpop.f32.mrb[0].mxu0
        %v2090 = vadd.f32 %v2005, %v2089
        %v2091 = vpop.f32.mrb[0].mxu0
        %v2092 = vpop.f32.mrb[0].mxu0
        %v2093 = vadd.f32 %v2005, %v2092
        %v2094 = vpop.f32.mrb[0].mxu0
        %2095 = vmatprep.mubr.bf16.mxu0 0
        %2096 = vmatmul.mubr.bf16.gmra.mrb[0].mxu0 %v1969
        %v2097 = vpop.f32.mrb[0].mxu0
        %v2098 = vadd.f32 %v2005, %v2097
        %v2099 = vpop.f32.mrb[0].mxu0
        %v2100 = vpop.f32.mrb[0].mxu0
        %v2101 = vadd.f32 %v2005, %v2100
        %v2102 = vpop.f32.mrb[0].mxu0
        %2103 = vmatprep.mubr.bf16.mxu0 0
        %2104 = vmatmul.mubr.bf16.gmra.mrb[0].mxu0 %v1970
        %v2105 = vpop.f32.mrb[0].mxu0
        %v2106 = vadd.f32 %v2005, %v2105
        %v2107 = vpop.f32.mrb[0].mxu0
        %v2108 = vpop.f32.mrb[0].mxu0
        %v2109 = vadd.f32 %v2005, %v2108
        %v2110 = vpop.f32.mrb[0].mxu0
        %2111 = vmatprep.mubr.bf16.mxu0 0
        %2112 = vmatmul.mubr.bf16.gmra.mrb[0].mxu0 %v1971
        %v2113 = vpop.f32.mrb[0].mxu0
        %v2114 = vadd.f32 %v2005, %v2113
        %v2115 = vpop.f32.mrb[0].mxu0
        %v2116 = vpop.f32.mrb[0].mxu0
        %v2117 = vadd.f32 %v2005, %v2116
        %v2118 = vpop.f32.mrb[0].mxu0
        %2119 = vmatprep.mubr.bf16.mxu0 0
        %2120 = vmatmul.mubr.bf16.gmra.mrb[0].mxu0 %v1972
        %v2121 = vpop.f32.mrb[0].mxu0
        %v2122 = vadd.f32 %v2005, %v2121
        %v2123 = vpop.f32.mrb[0].mxu0
        %v2124 = vpop.f32.mrb[0].mxu0
        %v2125 = vadd.f32 %v2005, %v2124
        %v2126 = vpop.f32.mrb[0].mxu0
        %2127 = vmatprep.mubr.bf16.mxu0 0
        %2128 = vmatmul.mubr.bf16.gmra.mrb[0].mxu0 %v1973
        %v2129 = vpop.f32.mrb[0].mxu0
        %v2130 = vadd.f32 %v2005, %v2129
        %v2131 = vpop.f32.mrb[0].mxu0
        %v2132 = vpop.f32.mrb[0].mxu0
        %v2133 = vadd.f32 %v2005, %v2132
        %v2134 = vpop.f32.mrb[0].mxu0
        %2135 = vmatprep.mubr.bf16.mxu0 0
        %2136 = vmatmul.mubr.bf16.gmra.mrb[0].mxu0 %v1974
        %v2137 = vpop.f32.mrb[0].mxu0
        %v2138 = vadd.f32 %v2005, %v2137
        %v2139 = vpop.f32.mrb[0].mxu0
        %v2140 = vpop.f32.mrb[0].mxu0
        %v2141 = vadd.f32 %v2005, %v2140
        %v2142 = vpop.f32.mrb[0].mxu0
        %2143 = vmatprep.mubr.bf16.mxu0 0
        %2144 = vmatmul.mubr.bf16.gmra.mrb[0].mxu0 %v1975
        %v2145 = vpop.f32.mrb[0].mxu0
        %v2146 = vadd.f32 %v2005, %v2145
        %v2147 = vpop.f32.mrb[0].mxu0
        %v2148 = vpop.f32.mrb[0].mxu0
        %v2149 = vadd.f32 %v2005, %v2148
        %v2150 = vpop.f32.mrb[0].mxu0
        %2151 = vmatprep.mubr.bf16.mxu0 0
        %2152 = vmatmul.mubr.bf16.gmra.mrb[0].mxu0 %v1976
        %v2153 = vpop.f32.mrb[0].mxu0
        %v2154 = vadd.f32 %v2005, %v2153
        %v2155 = vpop.f32.mrb[0].mxu0
        %v2156 = vpop.f32.mrb[0].mxu0
        %v2157 = vadd.f32 %v2005, %v2156
        %v2158 = vpop.f32.mrb[0].mxu0
        %2159 = vmatprep.mubr.bf16.mxu0 0
        %2160 = vmatmul.mubr.bf16.gmra.mrb[0].mxu0 %v1977
        %v2161 = vpop.f32.mrb[0].mxu0
        %v2162 = vadd.f32 %v2005, %v2161
        %v2163 = vpop.f32.mrb[0].mxu0
        %v2164 = vpop.f32.mrb[0].mxu0
        %v2165 = vadd.f32 %v2005, %v2164
        %v2166 = vpop.f32.mrb[0].mxu0
        %2167 = vmatprep.mubr.bf16.mxu0 0
        %2168 = vmatmul.mubr.bf16.gmra.mrb[0].mxu0 %v1978
        %v2169 = vpop.f32.mrb[0].mxu0
        %v2170 = vadd.f32 %v2005, %v2169
        %v2171 = vpop.f32.mrb[0].mxu0
        %v2172 = vpop.f32.mrb[0].mxu0
        %v2173 = vadd.f32 %v2005, %v2172
        %v2174 = vpop.f32.mrb[0].mxu0
        %2175 = vmatprep.mubr.bf16.mxu0 0
        %2176 = vmatmul.mubr.bf16.gmra.mrb[0].mxu0 %v1979
        %v2177 = vpop.f32.mrb[0].mxu0
        %v2178 = vadd.f32 %v2005, %v2177
        %v2179 = vpop.f32.mrb[0].mxu0
        %v2180 = vpop.f32.mrb[0].mxu0
        %v2181 = vadd.f32 %v2005, %v2180
        %v2182 = vpop.f32.mrb[0].mxu0
        %2183 = vmatprep.mubr.bf16.mxu0 0
        %2184 = vmatmul.mubr.bf16.gmra.mrb[0].mxu0 %v1980
        %v2185 = vpop.f32.mrb[0].mxu0
        %v2186 = vadd.f32 %v2005, %v2185
        %v2187 = vpop.f32.mrb[0].mxu0
        %v2188 = vpop.f32.mrb[0].mxu0
        %v2189 = vadd.f32 %v2005, %v2188
        %v2190 = vpop.f32.mrb[0].mxu0
        %2191 = vmatprep.mubr.bf16.mxu0 0
        %2192 = vmatmul.mubr.bf16.gmra.mrb[0].mxu0 %v1981
        %v2193 = vpop.f32.mrb[0].mxu0
        %v2194 = vadd.f32 %v2005, %v2193
        %v2195 = vpop.f32.mrb[0].mxu0
        %v2196 = vpop.f32.mrb[0].mxu0
        %v2197 = vadd.f32 %v2005, %v2196
        %v2198 = vpop.f32.mrb[0].mxu0
        %2199 = vmatprep.mubr.bf16.mxu0 0
        %2200 = vmatmul.mubr.bf16.gmra.mrb[0].mxu0 %v1982
        %v2201 = vpop.f32.mrb[0].mxu0
        %v2202 = vadd.f32 %v2005, %v2201
        %v2203 = vpop.f32.mrb[0].mxu0
        %v2204 = vpop.f32.mrb[0].mxu0
        %v2205 = vadd.f32 %v2005, %v2204
        %v2206 = vpop.f32.mrb[0].mxu0
        %2207 = vmatprep.mubr.bf16.mxu0 0
        %2208 = vmatmul.mubr.bf16.gmra.mrb[0].mxu0 %v1983
        %v2209 = vpop.f32.mrb[0].mxu0
        %v2210 = vadd.f32 %v2005, %v2209
        %v2211 = vpop.f32.mrb[0].mxu0
        %v2212 = vpop.f32.mrb[0].mxu0
        %v2213 = vadd.f32 %v2005, %v2212
        %v2214 = vpop.f32.mrb[0].mxu0
        %2215 = vdwg.mxu0
        %2216 = vst [vmem:[%s574] sm:$0xff] %v2090
        %2217 = vst [vmem:[%s574 + $0x8] sm:$0xff] %v2093
        %2218 = vst [vmem:[%s574 + $0x10] sm:$0xff] %v2098
        %2219 = vst [vmem:[%s574 + $0x18] sm:$0xff] %v2101
        %2220 = vst [vmem:[%s574 + $0x20] sm:$0xff] %v2106
        %2221 = vst [vmem:[%s574 + $0x28] sm:$0xff] %v2109
        %2222 = vst [vmem:[%s574 + $0x30] sm:$0xff] %v2114
        %2223 = vst [vmem:[%s574 + $0x38] sm:$0xff] %v2117
        %2224 = vst [vmem:[%s574 + $0x40] sm:$0xff] %v2122
        %2225 = vst [vmem:[%s574 + $0x48] sm:$0xff] %v2125
        %2226 = vst [vmem:[%s574 + $0x50] sm:$0xff] %v2130
        %2227 = vst [vmem:[%s574 + $0x58] sm:$0xff] %v2133
        %2228 = vst [vmem:[%s574 + $0x60] sm:$0xff] %v2138
        %2229 = vst [vmem:[%s574 + $0x68] sm:$0xff] %v2141
        %2230 = vst [vmem:[%s574 + $0x70] sm:$0xff] %v2146
        %2231 = vst [vmem:[%s574 + $0x78] sm:$0xff] %v2149
        %2232 = vst [vmem:[%s574 + $0x80] sm:$0xff] %v2154
        %2233 = vst [vmem:[%s574 + $0x88] sm:$0xff] %v2157
        %2234 = vst [vmem:[%s574 + $0x90] sm:$0xff] %v2162
        %2235 = vst [vmem:[%s574 + $0x98] sm:$0xff] %v2165
        %2236 = vst [vmem:[%s574 + $0xa0] sm:$0xff] %v2170
        %2237 = vst [vmem:[%s574 + $0xa8] sm:$0xff] %v2173
        %2238 = vst [vmem:[%s574 + $0xb0] sm:$0xff] %v2178
        %2239 = vst [vmem:[%s574 + $0xb8] sm:$0xff] %v2181
        %2240 = vst [vmem:[%s574 + $0xc0] sm:$0xff] %v2186
        %2241 = vst [vmem:[%s574 + $0xc8] sm:$0xff] %v2189
        %2242 = vst [vmem:[%s574 + $0xd0] sm:$0xff] %v2194
        %2243 = vst [vmem:[%s574 + $0xd8] sm:$0xff] %v2197
        %2244 = vst [vmem:[%s574 + $0xe0] sm:$0xff] %v2202
        %2245 = vst [vmem:[%s574 + $0xe8] sm:$0xff] %v2205
        %2246 = vst [vmem:[%s574 + $0xf0] sm:$0xff] %v2210
        %2247 = vst [vmem:[%s574 + $0xf8] sm:$0xff] %v2213
        %s2248 = sand.u32 %s309, 1
        %s2249 = scalar_lea.sflag [#allocation4], %s2248
        %s2250 = sand.u32 %s309, 1
        %s2251 = smul.addr %s2250, 256
        %s2252 = scalar_lea.vmem [#allocation14], %s2251
        %s2253 = sand.u32 %s335, 1
        %s2254 = scalar_lea.sflag [#allocation16], %s2253
        %s2255 = sand.u32 %s335, 1
        %s2256 = smul.addr %s2255, 256
        %s2257 = scalar_lea.vmem [#allocation15], %s2256
        // Predicated region
        $region97: #{tpu_custom_call.1} parent=67 // pred_check
          %p2258 = pneg %p319
        $region98: #{tpu_custom_call.1} parent=67 // pred_check_branch
          %2260 = sbr.rel (%p2258) target = $region100
        $region99: #{tpu_custom_call.1} parent=67 // pred_region
          %s2261 = smul.u32 32, %s39
          %s2263 = ssub.s32 4096, 4096
          %2264 = vsyncadd %s2249, %s2263
          %s2265 = smul.addr %s2261, 128
          %s2266 = scalar_lea.hbm %s12, %s2265
          %s2267 = sshll.u32 %s2252, 4
          %s2268 = int_to_ptr.vmem [resolvable:$true] %s2267
          %2273 = dma.vmem_to_hbm [thread:$0]  %s2268, 4096, %s2266, %s2249, 128, 128, 8
        $region100: #{tpu_custom_call.1} parent=67 // pred_fallthru
          _
        // Predicated region
        $region101: #{tpu_custom_call.1} parent=67 // pred_check
          %p2274 = pneg %p345
        $region102: #{tpu_custom_call.1} parent=67 // pred_check_branch
          %2276 = sbr.rel (%p2274) target = $region104
        $region103: #{tpu_custom_call.1} parent=67 // pred_region
          %s2277 = smul.u32 32, %s39
          %s2279 = ssub.s32 4096, 4096
          %2280 = vsyncadd %s2254, %s2279
          %s2281 = smul.addr %s2277, 128
          %s2282 = scalar_lea.hbm %s13, %s2281
          %s2283 = sshll.u32 %s2257, 4
          %s2284 = int_to_ptr.vmem [resolvable:$true] %s2283
          %2289 = dma.vmem_to_hbm [thread:$0]  %s2284, 4096, %s2282, %s2254, 128, 128, 8
        $region104: #{tpu_custom_call.1} parent=67 // pred_fallthru
          _
      $region68: #{tpu_custom_call.1} parent=5 // pred_fallthru
        _
      %p2290 = scmp.le.s32.totalorder 2, %s34
      // Predicated region
      $region105: #{tpu_custom_call.1} parent=5 // pred_check
        %p2291 = pneg %p2290
      $region106: #{tpu_custom_call.1} parent=5 // pred_check_branch
        %2293 = sbr.rel (%p2291) target = $region108
      $region107: #{tpu_custom_call.1} parent=5 // pred_region
        %s2294 = ssub.s32 %s34, 2
        // Predicated region
        $region109: #{tpu_custom_call.1} parent=107 // pred_check
          %p2295 = pneg %p325
        $region110: #{tpu_custom_call.1} parent=107 // pred_check_branch
          %2297 = sbr.rel (%p2295) target = $region112
        $region111: #{tpu_custom_call.1} parent=107 // pred_region
          %s2298 = sand.u32 %s310, 1
          %s2299 = scalar_lea.sflag [#allocation4], %s2298
          %s2300 = sand.u32 %s310, 1
          %s2301 = smul.addr %s2300, 256
          %s2302 = scalar_lea.vmem [#allocation14], %s2301
          %2303 = dma.done %s2299, 4096
        $region112: #{tpu_custom_call.1} parent=107 // pred_fallthru
          _
        // Predicated region
        $region113: #{tpu_custom_call.1} parent=107 // pred_check
          %p2304 = pneg %p351
        $region114: #{tpu_custom_call.1} parent=107 // pred_check_branch
          %2306 = sbr.rel (%p2304) target = $region116
        $region115: #{tpu_custom_call.1} parent=107 // pred_region
          %s2307 = sand.u32 %s336, 1
          %s2308 = scalar_lea.sflag [#allocation16], %s2307
          %s2309 = sand.u32 %s336, 1
          %s2310 = smul.addr %s2309, 256
          %s2311 = scalar_lea.vmem [#allocation15], %s2310
          %2312 = dma.done %s2308, 4096
        $region116: #{tpu_custom_call.1} parent=107 // pred_fallthru
          _
      $region108: #{tpu_custom_call.1} parent=5 // pred_fallthru
        _
    $region6: #{tpu_custom_call.1} parent=1 // loop_footer
      %s38 = sadd.s32 1, %s34
    $region7: #{tpu_custom_call.1} parent=1 // loop_footer_branch
      %33 = sbr.rel target = $region3
    $region8: #{tpu_custom_call.1} parent=1 // loop_exit
      _
    %2313 = vsyncpa [#allocation3], 1
    %s2314 = scalar_lea.sflag [#allocation3], 1
    %2315 = vsyncpa %s2314, 1
    %2316 = vsyncpa [#allocation6], 1
    %s2317 = scalar_lea.sflag [#allocation6], 1
    %2318 = vsyncpa %s2317, 1
    %2319 = vsyncpa [#allocation9], 1
    %2320 = vsyncpa [#allocation12], 1
    %2321 = vsyncpa [#allocation4], 1
    %s2322 = scalar_lea.sflag [#allocation4], 1
    %2323 = vsyncpa %s2322, 1
    %2324 = vsyncpa [#allocation16], 1
    %s2325 = scalar_lea.sflag [#allocation16], 1
    %2326 = vsyncpa %s2325, 1

</llo_original>
